<compile_context>
chip_gen: v7x
topology: tpu7x:2x2x1
jax: 0.10.0
libtpu: 0.0.40
codegen_flags: <defaults>
</compile_context>

<pallas_src>
import functools

import jax
import jax.numpy as jnp
from jax.experimental import pallas as pl
from jax.experimental.pallas import tpu as pltpu


def _round_up(n, m):
    return -(-n // m) * m


def _embed_kernel(x_ref, w_ref, p_ref, o_ref, *, eps, c_out):
    # x_ref: (1, K, tile_hw)      compute dtype (bf16 by default)
    # w_ref: (C_out_pad, K)       compute dtype, resident
    # p_ref: (C_out_pad, 8) f32   col 0 bias, col 1 gamma, col 2 beta
    # o_ref: (1, C_out_pad, tile_hw)
    # Conv3d as a patch matmul on the MXU, channels-first output, f32 accumulate.
    y = jnp.dot(w_ref[...], x_ref[0], preferred_element_type=jnp.float32)
    y = y + p_ref[:, 0:1]                                   # conv bias

    # LayerNorm over the channel (sublane) axis.  Padded channel rows of w_mat /
    # bias / gamma / beta are exact zeros, so both sums are unaffected without any
    # masking; divide by the real C_out.  One-pass variance: E[y^2] - mean^2.
    inv_c = 1.0 / c_out
    mean = jnp.sum(y, axis=0, keepdims=True) * inv_c         # (1, tile_hw)
    ex2 = jnp.sum(y * y, axis=0, keepdims=True) * inv_c      # (1, tile_hw)
    var = ex2 - mean * mean
    scale = jax.lax.rsqrt(var + eps)
    out = (y - mean) * scale * p_ref[:, 1:2] + p_ref[:, 2:3]
    o_ref[0] = out.astype(o_ref.dtype)


def space_time_cube_embedding(x, conv_w, conv_b, ln_gamma, ln_beta, *,
                              eps=1e-5, tile_hw=None,
                              compute_dtype=jnp.bfloat16, out_dtype=None):
    """x: (B, T, C_in, H, W); conv_w: (C_out, C_in, 2, 4, 4); conv_b/ln_*: (C_out,).

    compute_dtype: matmul operand dtype (bf16 default = native MXU path on
        v5e/v6e/v7x); accumulation and LayerNorm stay in f32.
    out_dtype: output dtype (defaults to x.dtype to match the module; pass
        jnp.bfloat16 to halve output writeback if downstream accepts it).
    tile_hw: lane tile over H'*W' patches (default 512 for bf16, 256 for f32).
    """
    B, T, C_in, H, W = x.shape
    C_out = conv_w.shape[0]
    kt, kh, kw = 2, 4, 4
    assert T % kt == 0 and H % kh == 0 and W % kw == 0
    Tp, Hp, Wp = T // kt, H // kh, W // kw
    K = C_in * kt * kh * kw
    HW = Hp * Wp
    BT = B * Tp

    out_dtype = x.dtype if out_dtype is None else out_dtype
    compute_dtype = jnp.dtype(x.dtype if compute_dtype is None else compute_dtype)

    # ---- glue: patch extraction + operand cast fused into ONE copy pass.
    # x_t[bt, k, hw] with k in (c, kt, kh, kw) order and hw = h'*Wp + w'
    # contiguous inside each (b, t'), so the kernel can emit the final
    # channels-first layout directly (no output-side wrapper transpose).
    xr = x.reshape(B, Tp, kt, C_in, Hp, kh, Wp, kw)
    xr = jnp.transpose(xr, (0, 1, 3, 2, 5, 7, 4, 6))     # (B,Tp,C,kt,kh,kw,Hp,Wp)
    x_t = xr.reshape(BT, K, HW).astype(compute_dtype)

    w_mat = conv_w.reshape(C_out, K).astype(compute_dtype)   # (C_out, K)

    # ---- padding: lane-dense channels; HW tiles multiple of 128 (or full HW).
    C_out_pad = _round_up(C_out, 128)
    if tile_hw is None:
        tile_hw = 512 if compute_dtype.itemsize <= 2 else 256
    if HW <= tile_hw:
        tile_hw, hw_pad = HW, HW
    else:
        tile_hw = _round_up(tile_hw, 128)
        hw_pad = _round_up(HW, tile_hw)
    # v7x has two TensorCores: avoid a single-step grid when there is real work.
    if BT == 1 and hw_pad == tile_hw and HW >= 256:
        tile_hw = _round_up(-(-HW // 2), 128)
        hw_pad = _round_up(HW, tile_hw)

    if hw_pad != HW:
        x_t = jnp.pad(x_t, ((0, 0), (0, 0), (0, hw_pad - HW)))
    if C_out_pad != C_out:
        w_mat = jnp.pad(w_mat, ((0, C_out_pad - C_out), (0, 0)))

    # Merged per-channel params (one tiny resident block instead of 3 DMAs).
    params = jnp.stack([conv_b, ln_gamma, ln_beta], axis=1).astype(jnp.float32)
    params = jnp.pad(params, ((0, C_out_pad - C_out), (0, 8 - 3)))  # (C_out_pad, 8)

    grid = (BT, hw_pad // tile_hw)

    # VMEM budget: resident single-buffered weight + double-buffered activation /
    # output tiles + f32 LN temporaries, capped at 80% of this generation's
    # physical VMEM (64 MiB on v7x, 128 MiB on v5e/v6e).
    cb = compute_dtype.itemsize
    ob = jnp.dtype(out_dtype).itemsize
    vmem_est = (2 * K * tile_hw * cb              # input tiles (double buffered)
                + 2 * C_out_pad * tile_hw * ob    # output tiles (double buffered)
                + C_out_pad * K * cb              # resident weight (single buffer)
                + C_out_pad * 8 * 4               # params
                + 2 * C_out_pad * tile_hw * 4)    # f32 matmul/LN temporaries
    try:
        vmem_cap = int(0.8 * pltpu.get_tpu_info().vmem_capacity_bytes)
    except Exception:
        vmem_cap = 48 << 20
    vmem_limit = int(min(max(vmem_est + (4 << 20), 32 << 20), vmem_cap))

    kernel = functools.partial(_embed_kernel, eps=eps, c_out=C_out)

    def make_call(single_buffer_resident):
        resident = {}
        if single_buffer_resident and hasattr(pl, "Buffered"):
            resident = dict(pipeline_mode=pl.Buffered(1))
        return pl.pallas_call(
            kernel,
            out_shape=jax.ShapeDtypeStruct((BT, C_out_pad, hw_pad), out_dtype),
            grid_spec=pltpu.PrefetchScalarGridSpec(
                num_scalar_prefetch=0,
                grid=grid,
                in_specs=[
                    pl.BlockSpec((1, K, tile_hw), lambda g, j: (g, 0, j)),
                    pl.BlockSpec((C_out_pad, K), lambda g, j: (0, 0), **resident),
                    pl.BlockSpec((C_out_pad, 8), lambda g, j: (0, 0), **resident),
                ],
                out_specs=pl.BlockSpec((1, C_out_pad, tile_hw),
                                       lambda g, j: (g, 0, j)),
            ),
            compiler_params=pltpu.CompilerParams(
                dimension_semantics=("parallel", "parallel"),
                vmem_limit_bytes=vmem_limit),
        )

    try:
        out_flat = make_call(True)(x_t, w_mat, params)
    except Exception:
        # Fallback for jax builds that reject pipeline_mode=pl.Buffered(1):
        # the resident weight is simply double-buffered (extra VMEM, same result).
        out_flat = make_call(False)(x_t, w_mat, params)

    # ---- glue: drop padding, reshape (free when no padding), squeeze T' if 1.
    out = out_flat
    if C_out_pad != C_out or hw_pad != HW:
        out = out[:, :C_out, :HW]
    out = out.reshape(B, Tp, C_out, Hp, Wp)
    if Tp == 1:
        out = jnp.squeeze(out, axis=1)
    return out


def _reference(x, conv_w, conv_b, ln_gamma, ln_beta, eps=1e-5):
    """Pure-JAX reference replicating the PyTorch forward."""
    xc = jnp.transpose(x, (0, 2, 1, 3, 4))  # (B, C, T, H, W)
    y = jax.lax.conv_general_dilated(
        xc.astype(jnp.float32), conv_w.astype(jnp.float32),
        window_strides=(2, 4, 4), padding="VALID",
        dimension_numbers=("NCDHW", "OIDHW", "NCDHW"))
    y = y + conv_b.reshape(1, -1, 1, 1, 1)
    y = jnp.transpose(y, (0, 2, 3, 4, 1))  # (B, T', H', W', C_out)
    mean = jnp.mean(y, axis=-1, keepdims=True)
    var = jnp.mean((y - mean) ** 2, axis=-1, keepdims=True)
    y = (y - mean) / jnp.sqrt(var + eps) * ln_gamma + ln_beta
    y = jnp.transpose(y, (0, 1, 4, 2, 3))  # (B, T', C_out, H', W')
    if y.shape[1] == 1:
        y = jnp.squeeze(y, axis=1)
    return y.astype(x.dtype)


if __name__ == "__main__":
    # Small shapes consistent with the module: T=2 (time cube), H=W=16.
    B, T, C_in, H, W = 2, 2, 4, 16, 16
    C_out = 32

    key = jax.random.PRNGKey(0)
    kx, kw_, kb, kg, kbe = jax.random.split(key, 5)

    x = jax.random.normal(kx, (B, T, C_in, H, W), dtype=jnp.float32)
    conv_w = jax.random.normal(kw_, (C_out, C_in, 2, 4, 4), dtype=jnp.float32) * 0.05
    conv_b = jax.random.normal(kb, (C_out,), dtype=jnp.float32) * 0.01
    ln_gamma = 1.0 + 0.1 * jax.random.normal(kg, (C_out,), dtype=jnp.float32)
    ln_beta = 0.1 * jax.random.normal(kbe, (C_out,), dtype=jnp.float32)

    ref = _reference(x, conv_w, conv_b, ln_gamma, ln_beta)

    # f32-operand path: tight check against the reference.
    out_f32 = space_time_cube_embedding(x, conv_w, conv_b, ln_gamma, ln_beta,
                                        compute_dtype=jnp.float32)
    out_f32 = jax.block_until_ready(out_f32)
    assert out_f32.shape == (B, C_out, H // 4, W // 4), out_f32.shape
    assert jnp.allclose(out_f32, ref, atol=1e-4, rtol=1e-4), \
        float(jnp.abs(out_f32 - ref).max())

    # Default bf16-operand path (native MXU dtype): looser tolerance vs. f32 ref.
    out_bf16 = space_time_cube_embedding(x, conv_w, conv_b, ln_gamma, ln_beta)
    out_bf16 = jax.block_until_ready(out_bf16)
    assert out_bf16.shape == (B, C_out, H // 4, W // 4), out_bf16.shape
    assert jnp.allclose(out_bf16, ref, atol=1e-1, rtol=1e-1), \
        float(jnp.abs(out_bf16 - ref).max())

    print("KERNEL_OK")
</pallas_src>

<mosaic_0001>
module attributes {stable_mosaic.version = 11 : i64} {
  func.func @_embed_kernel(%arg0: i32, %arg1: i32, %arg2: memref<1x128x16xf32, #tpu.memory_space<vmem>>, %arg3: memref<128x128xf32, #tpu.memory_space<vmem>>, %arg4: memref<128x8xf32, #tpu.memory_space<vmem>>, %arg5: memref<1x128x16xf32, #tpu.memory_space<vmem>>) attributes {dimension_semantics = [#tpu.dimension_semantics<parallel>, #tpu.dimension_semantics<parallel>], iteration_bounds = array<i64: 2, 1>, scalar_prefetch = 0 : i64, scratch_operands = 0 : i64, tpu.core_type = #tpu.core_type<tc>, window_params = [{transform_indices = @transform_0, window_bounds = array<i64: 1, 128, 16>}, {pipeline_mode = #tpu.pipeline_mode<synchronous>, transform_indices = @transform_1, window_bounds = array<i64: 128, 128>}, {pipeline_mode = #tpu.pipeline_mode<synchronous>, transform_indices = @transform_2, window_bounds = array<i64: 128, 8>}, {transform_indices = @transform_3, window_bounds = array<i64: 1, 128, 16>}]} {
    %c0 = arith.constant 0 : index
    %c0_0 = arith.constant 0 : index
    %0 = vector.load %arg3[%c0, %c0_0] : memref<128x128xf32, #tpu.memory_space<vmem>>, vector<128x128xf32>
    %c0_1 = arith.constant 0 : index
    %c0_2 = arith.constant 0 : index
    %c0_3 = arith.constant 0 : index
    %1 = vector.load %arg2[%c0_1, %c0_2, %c0_3] : memref<1x128x16xf32, #tpu.memory_space<vmem>>, vector<1x128x16xf32>
    %2 = vector.shape_cast %1 : vector<1x128x16xf32> to vector<128x16xf32>
    %cst = arith.constant dense<0.000000e+00> : vector<128x16xf32>
    %3 = tpu.matmul %0, %2, %cst {dimension_numbers = #tpu.dot_dimension_numbers<[1], [0], [0], [1], [0, 0, 1, 1], [], []>} : vector<128x128xf32>, vector<128x16xf32>, vector<128x16xf32> -> vector<128x16xf32>
    %c0_4 = arith.constant 0 : index
    %c0_5 = arith.constant 0 : index
    %4 = vector.load %arg4[%c0_4, %c0_5] : memref<128x8xf32, #tpu.memory_space<vmem>>, vector<128x1xf32>
    %5 = vector.broadcast %4 : vector<128x1xf32> to vector<128x16xf32>
    %6 = arith.addf %3, %5 : vector<128x16xf32>
    %cst_6 = arith.constant dense<0.000000e+00> : vector<16xf32>
    %7 = vector.multi_reduction <add>, %6, %cst_6 [0] : vector<128x16xf32> to vector<16xf32>
    %8 = vector.shape_cast %7 : vector<16xf32> to vector<1x16xf32>
    %cst_7 = arith.constant 3.125000e-02 : f32
    %9 = vector.broadcast %cst_7 : f32 to vector<1x16xf32>
    %10 = arith.mulf %8, %9 : vector<1x16xf32>
    %11 = arith.mulf %6, %6 : vector<128x16xf32>
    %cst_8 = arith.constant dense<0.000000e+00> : vector<16xf32>
    %12 = vector.multi_reduction <add>, %11, %cst_8 [0] : vector<128x16xf32> to vector<16xf32>
    %13 = vector.shape_cast %12 : vector<16xf32> to vector<1x16xf32>
    %cst_9 = arith.constant 3.125000e-02 : f32
    %14 = vector.broadcast %cst_9 : f32 to vector<1x16xf32>
    %15 = arith.mulf %13, %14 : vector<1x16xf32>
    %16 = arith.mulf %10, %10 : vector<1x16xf32>
    %17 = arith.subf %15, %16 : vector<1x16xf32>
    %cst_10 = arith.constant 9.99999974E-6 : f32
    %18 = vector.broadcast %cst_10 : f32 to vector<1x16xf32>
    %19 = arith.addf %17, %18 : vector<1x16xf32>
    %20 = math.rsqrt %19 : vector<1x16xf32>
    %21 = vector.broadcast %10 : vector<1x16xf32> to vector<128x16xf32>
    %22 = arith.subf %6, %21 : vector<128x16xf32>
    %23 = vector.broadcast %20 : vector<1x16xf32> to vector<128x16xf32>
    %24 = arith.mulf %22, %23 : vector<128x16xf32>
    %c0_11 = arith.constant 0 : index
    %c1 = arith.constant 1 : index
    %25 = vector.load %arg4[%c0_11, %c1] : memref<128x8xf32, #tpu.memory_space<vmem>>, vector<128x1xf32>
    %26 = vector.broadcast %25 : vector<128x1xf32> to vector<128x16xf32>
    %27 = arith.mulf %24, %26 : vector<128x16xf32>
    %c0_12 = arith.constant 0 : index
    %c2 = arith.constant 2 : index
    %28 = vector.load %arg4[%c0_12, %c2] : memref<128x8xf32, #tpu.memory_space<vmem>>, vector<128x1xf32>
    %29 = vector.broadcast %28 : vector<128x1xf32> to vector<128x16xf32>
    %30 = arith.addf %27, %29 : vector<128x16xf32>
    %c0_13 = arith.constant 0 : index
    %c0_14 = arith.constant 0 : index
    %c0_15 = arith.constant 0 : index
    %31 = vector.load %arg5[%c0_13, %c0_14, %c0_15] : memref<1x128x16xf32, #tpu.memory_space<vmem>>, vector<1x128x16xf32>
    %32 = vector.shape_cast %31 : vector<1x128x16xf32> to vector<128x16xf32>
    %33 = vector.shape_cast %30 : vector<128x16xf32> to vector<1x128x16xf32>
    tpu.vector_store %arg5[%c0_13, %c0_14, %c0_15], %33 {strides = array<i32>} : memref<1x128x16xf32, #tpu.memory_space<vmem>>, vector<1x128x16xf32>,
    return
  }
  func.func @transform_0(%arg0: i32, %arg1: i32) -> (i32, i32, i32) {
    %c0_i32 = arith.constant 0 : i32
    %c0_i32_0 = arith.constant 0 : i32
    return %arg0, %c0_i32, %arg1 : i32, i32, i32
  }
  func.func @transform_1(%arg0: i32, %arg1: i32) -> (i32, i32) {
    %c0_i32 = arith.constant 0 : i32
    %c0_i32_0 = arith.constant 0 : i32
    %c0_i32_1 = arith.constant 0 : i32
    return %c0_i32, %c0_i32_0 : i32, i32
  }
  func.func @transform_2(%arg0: i32, %arg1: i32) -> (i32, i32) {
    %c0_i32 = arith.constant 0 : i32
    %c0_i32_0 = arith.constant 0 : i32
    %c0_i32_1 = arith.constant 0 : i32
    return %c0_i32, %c0_i32_0 : i32, i32
  }
  func.func @transform_3(%arg0: i32, %arg1: i32) -> (i32, i32, i32) {
    %c0_i32 = arith.constant 0 : i32
    %c0_i32_0 = arith.constant 0 : i32
    return %arg0, %c0_i32, %arg1 : i32, i32, i32
  }
}

module attributes {stable_mosaic.version = 11 : i64} {
  func.func @_embed_kernel(%arg0: i32, %arg1: i32, %arg2: memref<1x128x16xf32, #tpu.memory_space<vmem>>, %arg3: memref<128x128xf32, #tpu.memory_space<vmem>>, %arg4: memref<128x8xf32, #tpu.memory_space<vmem>>, %arg5: memref<1x128x16xf32, #tpu.memory_space<vmem>>) attributes {dimension_semantics = [#tpu.dimension_semantics<parallel>, #tpu.dimension_semantics<parallel>], iteration_bounds = array<i64: 2, 1>, scalar_prefetch = 0 : i64, scratch_operands = 0 : i64, tpu.core_type = #tpu.core_type<tc>, window_params = [{transform_indices = @transform_0, window_bounds = array<i64: 1, 128, 16>}, {pipeline_mode = #tpu.pipeline_mode<synchronous>, transform_indices = @transform_1, window_bounds = array<i64: 128, 128>}, {pipeline_mode = #tpu.pipeline_mode<synchronous>, transform_indices = @transform_2, window_bounds = array<i64: 128, 8>}, {transform_indices = @transform_3, window_bounds = array<i64: 1, 128, 16>}]} {
    %c0 = arith.constant 0 : index
    %c0_0 = arith.constant 0 : index
    %0 = vector.load %arg3[%c0, %c0_0] : memref<128x128xf32, #tpu.memory_space<vmem>>, vector<128x128xf32>
    %c0_1 = arith.constant 0 : index
    %c0_2 = arith.constant 0 : index
    %c0_3 = arith.constant 0 : index
    %1 = vector.load %arg2[%c0_1, %c0_2, %c0_3] : memref<1x128x16xf32, #tpu.memory_space<vmem>>, vector<1x128x16xf32>
    %2 = vector.shape_cast %1 : vector<1x128x16xf32> to vector<128x16xf32>
    %cst = arith.constant dense<0.000000e+00> : vector<128x16xf32>
    %3 = tpu.matmul %0, %2, %cst {dimension_numbers = #tpu.dot_dimension_numbers<[1], [0], [0], [1], [0, 0, 1, 1], [], []>} : vector<128x128xf32>, vector<128x16xf32>, vector<128x16xf32> -> vector<128x16xf32>
    %c0_4 = arith.constant 0 : index
    %c0_5 = arith.constant 0 : index
    %4 = vector.load %arg4[%c0_4, %c0_5] : memref<128x8xf32, #tpu.memory_space<vmem>>, vector<128x1xf32>
    %5 = vector.broadcast %4 : vector<128x1xf32> to vector<128x16xf32>
    %6 = arith.addf %3, %5 : vector<128x16xf32>
    %cst_6 = arith.constant dense<0.000000e+00> : vector<16xf32>
    %7 = vector.multi_reduction <add>, %6, %cst_6 [0] : vector<128x16xf32> to vector<16xf32>
    %8 = vector.shape_cast %7 : vector<16xf32> to vector<1x16xf32>
    %cst_7 = arith.constant 3.125000e-02 : f32
    %9 = vector.broadcast %cst_7 : f32 to vector<1x16xf32>
    %10 = arith.mulf %8, %9 : vector<1x16xf32>
    %11 = arith.mulf %6, %6 : vector<128x16xf32>
    %cst_8 = arith.constant dense<0.000000e+00> : vector<16xf32>
    %12 = vector.multi_reduction <add>, %11, %cst_8 [0] : vector<128x16xf32> to vector<16xf32>
    %13 = vector.shape_cast %12 : vector<16xf32> to vector<1x16xf32>
    %cst_9 = arith.constant 3.125000e-02 : f32
    %14 = vector.broadcast %cst_9 : f32 to vector<1x16xf32>
    %15 = arith.mulf %13, %14 : vector<1x16xf32>
    %16 = arith.mulf %10, %10 : vector<1x16xf32>
    %17 = arith.subf %15, %16 : vector<1x16xf32>
    %cst_10 = arith.constant 9.99999974E-6 : f32
    %18 = vector.broadcast %cst_10 : f32 to vector<1x16xf32>
    %19 = arith.addf %17, %18 : vector<1x16xf32>
    %20 = math.rsqrt %19 : vector<1x16xf32>
    %21 = vector.broadcast %10 : vector<1x16xf32> to vector<128x16xf32>
    %22 = arith.subf %6, %21 : vector<128x16xf32>
    %23 = vector.broadcast %20 : vector<1x16xf32> to vector<128x16xf32>
    %24 = arith.mulf %22, %23 : vector<128x16xf32>
    %c0_11 = arith.constant 0 : index
    %c1 = arith.constant 1 : index
    %25 = vector.load %arg4[%c0_11, %c1] : memref<128x8xf32, #tpu.memory_space<vmem>>, vector<128x1xf32>
    %26 = vector.broadcast %25 : vector<128x1xf32> to vector<128x16xf32>
    %27 = arith.mulf %24, %26 : vector<128x16xf32>
    %c0_12 = arith.constant 0 : index
    %c2 = arith.constant 2 : index
    %28 = vector.load %arg4[%c0_12, %c2] : memref<128x8xf32, #tpu.memory_space<vmem>>, vector<128x1xf32>
    %29 = vector.broadcast %28 : vector<128x1xf32> to vector<128x16xf32>
    %30 = arith.addf %27, %29 : vector<128x16xf32>
    %c0_13 = arith.constant 0 : index
    %c0_14 = arith.constant 0 : index
    %c0_15 = arith.constant 0 : index
    %31 = vector.load %arg5[%c0_13, %c0_14, %c0_15] : memref<1x128x16xf32, #tpu.memory_space<vmem>>, vector<1x128x16xf32>
    %32 = vector.shape_cast %31 : vector<1x128x16xf32> to vector<128x16xf32>
    %33 = vector.shape_cast %30 : vector<128x16xf32> to vector<1x128x16xf32>
    tpu.vector_store %arg5[%c0_13, %c0_14, %c0_15], %33 {strides = array<i32>} : memref<1x128x16xf32, #tpu.memory_space<vmem>>, vector<1x128x16xf32>,
    return
  }
  func.func @transform_0(%arg0: i32, %arg1: i32) -> (i32, i32, i32) {
    %c0_i32 = arith.constant 0 : i32
    %c0_i32_0 = arith.constant 0 : i32
    return %arg0, %c0_i32, %arg1 : i32, i32, i32
  }
  func.func @transform_1(%arg0: i32, %arg1: i32) -> (i32, i32) {
    %c0_i32 = arith.constant 0 : i32
    %c0_i32_0 = arith.constant 0 : i32
    %c0_i32_1 = arith.constant 0 : i32
    return %c0_i32, %c0_i32_0 : i32, i32
  }
  func.func @transform_2(%arg0: i32, %arg1: i32) -> (i32, i32) {
    %c0_i32 = arith.constant 0 : i32
    %c0_i32_0 = arith.constant 0 : i32
    %c0_i32_1 = arith.constant 0 : i32
    return %c0_i32, %c0_i32_0 : i32, i32
  }
  func.func @transform_3(%arg0: i32, %arg1: i32) -> (i32, i32, i32) {
    %c0_i32 = arith.constant 0 : i32
    %c0_i32_0 = arith.constant 0 : i32
    return %arg0, %c0_i32, %arg1 : i32, i32, i32
  }
}

</mosaic_0001>

<llo_original>
// kernel: tpu_custom_call.1
$region0: #{tpu_custom_call.1}
  #allocation0 [shape = 'u32[]', space=smem, size = 0x4, offset = 0x4, fixed_abs, tag = 'smem constant byte address 0x4 - core index']
  #allocation1 [shape = 'u32[144,128]{1,0:T(1,128)}', space=vmem, size = 0x12000, scoped, tag = 'internal scratch']
  %s0 = inlined_call_operand.vmem [shape: f32[2,128,16], index: 0, kind: input, shape index: {}]
  %s1 = inlined_call_operand.vmem [shape: f32[128,128], index: 1, kind: input, shape index: {}]
  %s2 = inlined_call_operand.vmem [shape: f32[128,8], index: 2, kind: input, shape index: {}]
  %s3 = inlined_call_operand.vmem [shape: f32[2,128,16], index: 3, kind: output, shape index: {}]
  %s4 = sld [smem:[#allocation0]]
  $region45: #{tpu_custom_call.1} parent=0
    _
  %s6 = ssub.s32 1, %s4
  %s7 = scalar_select 0, %s6, %s4
  loop: start=0, step=1, limit=4
  $region2: #{tpu_custom_call.1} parent=0 // loop_pre_header
    _
  $region3: #{tpu_custom_call.1} parent=0 // loop_header
    %s9 = sphi 0, %s13
    %p10 = scmp.ge.s32.totalorder %s9, 4
    %s16 = sphi 0, %s28
    %s17 = sphi 0, %s24
    %s18 = sphi 0, %s16
    %s19 = sphi 0, %s17
    %s20 = sphi 0, %s18
    %s21 = sphi 0, %s19
    %s33 = sphi 0, %s35
    %s36 = sphi 0, %s33
    %s37 = sphi 0, %s36
    %s53 = sphi 0, %s37
    %s57 = sphi 0, %s57
    %s59 = sphi 0, %s57
    %s60 = sphi 0, %s59
    %s74 = sphi 0, %s60
    %s78 = sphi 0, %s78
    %s80 = sphi 0, %s78
    %s81 = sphi 0, %s80
    %s95 = sphi 0, %s81
    %s103 = sphi 0, %s105
    %s106 = sphi 0, %s103
    %s107 = sphi 0, %s106
    %s123 = sphi 0, %s107
  $region4: #{tpu_custom_call.1} parent=0 // loop_header_branch
    %12 = sbr.rel (%p10) target = $region8
  $region5: #{tpu_custom_call.1} parent=0 // loop_body
    %s14 = ssub.s32 %s9, 1
    %s15 = ssub.s32 %s9, 2
    %s22 = sadd.s32 1, %s17
    %p23 = scmp.ge.s32.totalorder %s22, 1
    %s24 = scalar_select %p23, 0, %s22
    %s25 = sadd.s32 1, %s16
    %s26 = scalar_select %p23, %s25, %s16
    %p27 = scmp.ge.s32.totalorder %s26, 2
    %s28 = scalar_select %p27, 0, %s26
    %s29 = ssub.s32 %s16, %s28
    %s30 = ssub.s32 %s17, %s24
    %s31 = sor.u32 %s29, %s30
    %p32 = scmp.eq.s32.totalorder %s31, 0
    %s34 = sadd.s32 %s33, 1
    %s35 = scalar_select %p32, %s33, %s34
    %p38 = pneg %p32
    %p39 = scmp.eq.s32.totalorder %s9, 1
    %p40 = por %p38, %p39
    %p41 = scmp.ne.s32.totalorder %s33, %s36
    %p42 = scmp.eq.s32.totalorder %s9, 0
    %p43 = por %p41, %p42
    %p44 = scmp.ne.s32.totalorder %s33, %s36
    %p45 = scmp.eq.s32.totalorder %s14, 1
    %p46 = por %p44, %p45
    %p47 = scmp.ne.s32.totalorder %s36, %s37
    %p48 = scmp.eq.s32.totalorder %s14, 0
    %p49 = por %p47, %p48
    %p50 = scmp.ne.s32.totalorder %s36, %s37
    %p51 = scmp.eq.s32.totalorder %s15, 1
    %p52 = por %p50, %p51
    %p54 = scmp.ne.s32.totalorder %s37, %s53
    %p55 = scmp.eq.s32.totalorder %s15, 0
    %p56 = por %p54, %p55
    %s58 = sadd.s32 %s57, 1
    %p61 = scmp.eq.s32.totalorder %s9, 1
    %p62 = scmp.ne.s32.totalorder %s57, %s59
    %p63 = scmp.eq.s32.totalorder %s9, 0
    %p64 = por %p62, %p63
    %p65 = scmp.ne.s32.totalorder %s57, %s59
    %p66 = scmp.eq.s32.totalorder %s14, 1
    %p67 = por %p65, %p66
    %p68 = scmp.ne.s32.totalorder %s59, %s60
    %p69 = scmp.eq.s32.totalorder %s14, 0
    %p70 = por %p68, %p69
    %p71 = scmp.ne.s32.totalorder %s59, %s60
    %p72 = scmp.eq.s32.totalorder %s15, 1
    %p73 = por %p71, %p72
    %p75 = scmp.ne.s32.totalorder %s60, %s74
    %p76 = scmp.eq.s32.totalorder %s15, 0
    %p77 = por %p75, %p76
    %s79 = sadd.s32 %s78, 1
    %p82 = scmp.eq.s32.totalorder %s9, 1
    %p83 = scmp.ne.s32.totalorder %s78, %s80
    %p84 = scmp.eq.s32.totalorder %s9, 0
    %p85 = por %p83, %p84
    %p86 = scmp.ne.s32.totalorder %s78, %s80
    %p87 = scmp.eq.s32.totalorder %s14, 1
    %p88 = por %p86, %p87
    %p89 = scmp.ne.s32.totalorder %s80, %s81
    %p90 = scmp.eq.s32.totalorder %s14, 0
    %p91 = por %p89, %p90
    %p92 = scmp.ne.s32.totalorder %s80, %s81
    %p93 = scmp.eq.s32.totalorder %s15, 1
    %p94 = por %p92, %p93
    %p96 = scmp.ne.s32.totalorder %s81, %s95
    %p97 = scmp.eq.s32.totalorder %s15, 0
    %p98 = por %p96, %p97
    %s99 = ssub.s32 %s16, %s28
    %s100 = ssub.s32 %s17, %s24
    %s101 = sor.u32 %s99, %s100
    %p102 = scmp.eq.s32.totalorder %s101, 0
    %s104 = sadd.s32 %s103, 1
    %s105 = scalar_select %p102, %s103, %s104
    %p108 = pneg %p102
    %p109 = scmp.eq.s32.totalorder %s9, 1
    %p110 = por %p108, %p109
    %p111 = scmp.ne.s32.totalorder %s103, %s106
    %p112 = scmp.eq.s32.totalorder %s9, 0
    %p113 = por %p111, %p112
    %p114 = scmp.ne.s32.totalorder %s103, %s106
    %p115 = scmp.eq.s32.totalorder %s14, 1
    %p116 = por %p114, %p115
    %p117 = scmp.ne.s32.totalorder %s106, %s107
    %p118 = scmp.eq.s32.totalorder %s14, 0
    %p119 = por %p117, %p118
    %p120 = scmp.ne.s32.totalorder %s106, %s107
    %p121 = scmp.eq.s32.totalorder %s15, 1
    %p122 = por %p120, %p121
    %p124 = scmp.ne.s32.totalorder %s107, %s123
    %p125 = scmp.eq.s32.totalorder %s15, 0
    %p126 = por %p124, %p125
    %p127 = scmp.le.s32.totalorder 1, %s9
    %p128 = scmp.lt.s32.totalorder %s9, 3
    %p129 = pnand %p127, %p128
    %p130 = pneg %p129
    // Predicated region
    $region9: #{tpu_custom_call.1} parent=5 // pred_check
      _
    $region10: #{tpu_custom_call.1} parent=5 // pred_check_branch
      %132 = sbr.rel (%p129) target = $region12
    $region11: #{tpu_custom_call.1} parent=5 // pred_region
      %s133 = ssub.s32 %s9, 1
      // Predicated region
      $region13: #{tpu_custom_call.1} parent=11 // pred_check
        %p134 = pneg %p70
      $region14: #{tpu_custom_call.1} parent=11 // pred_check_branch
        %136 = sbr.rel (%p134) target = $region16
      $region15: #{tpu_custom_call.1} parent=11 // pred_region
        _
      $region16: #{tpu_custom_call.1} parent=11 // pred_fallthru
        _
      // Predicated region
      $region17: #{tpu_custom_call.1} parent=11 // pred_check
        %p137 = pneg %p91
      $region18: #{tpu_custom_call.1} parent=11 // pred_check_branch
        %139 = sbr.rel (%p137) target = $region20
      $region19: #{tpu_custom_call.1} parent=11 // pred_region
        _
      $region20: #{tpu_custom_call.1} parent=11 // pred_fallthru
        _
    $region12: #{tpu_custom_call.1} parent=5 // pred_fallthru
      _
    %p140 = scmp.lt.s32.totalorder %s9, 2
    // Predicated region
    $region21: #{tpu_custom_call.1} parent=5 // pred_check
      %p141 = pneg %p140
    $region22: #{tpu_custom_call.1} parent=5 // pred_check_branch
      %143 = sbr.rel (%p141) target = $region24
    $region23: #{tpu_custom_call.1} parent=5 // pred_region
      // Predicated region
      $region25: #{tpu_custom_call.1} parent=23 // pred_check
        %p144 = pneg %p43
      $region26: #{tpu_custom_call.1} parent=23 // pred_check_branch
        %146 = sbr.rel (%p144) target = $region28
      $region27: #{tpu_custom_call.1} parent=23 // pred_region
        %p147 = scmp.lt.s32.totalorder %s16, 1
        %s148 = scalar_select %p147, %s16, 1
        %p149 = scmp.lt.s32.totalorder %s17, 0
        %s150 = scalar_select %p149, %s17, 0
        %s151 = smul.addr %s148, 16
        %s152 = sadd.s32 %s150, %s151
        %s153 = smul.addr %s152, 8
        %s154 = scalar_lea.vmem %s0, %s153
      $region28: #{tpu_custom_call.1} parent=23 // pred_fallthru
        _
    $region24: #{tpu_custom_call.1} parent=5 // pred_fallthru
      _
    %p155 = scmp.le.s32.totalorder 1, %s9
    %p156 = scmp.lt.s32.totalorder %s9, 3
    %p157 = pnand %p155, %p156
    %p158 = pneg %p157
    // Predicated region
    $region29: #{tpu_custom_call.1} parent=5 // pred_check
      _
    $region30: #{tpu_custom_call.1} parent=5 // pred_check_branch
      %160 = sbr.rel (%p157) target = $region32
    $region31: #{tpu_custom_call.1} parent=5 // pred_region
      %s161 = ssub.s32 %s9, 1
      %p162 = scmp.lt.s32.totalorder %s18, 1
      %s163 = scalar_select %p162, %s18, 1
      %p164 = scmp.lt.s32.totalorder %s19, 0
      %s165 = scalar_select %p164, %s19, 0
      %s166 = smul.addr %s163, 16
      %s167 = sadd.s32 %s165, %s166
      %s168 = smul.addr %s167, 8
      %s169 = scalar_lea.vmem %s0, %s168
      %p170 = pneg %p49
      %p171 = pneg %p46
      %p172 = pneg %p70
      %p173 = pneg %p67
      %p174 = pneg %p91
      %p175 = pneg %p88
      %p176 = pneg %p119
      %p177 = pneg %p116
      %p178 = scmp.lt.s32.totalorder %s18, 1
      %s179 = scalar_select %p178, %s18, 1
      %p180 = scmp.lt.s32.totalorder %s19, 0
      %s181 = scalar_select %p180, %s19, 0
      %s182 = smul.addr %s179, 16
      %s183 = sadd.s32 %s181, %s182
      %s184 = smul.addr %s183, 8
      %s185 = scalar_lea.vmem %s3, %s184
      %p186 = scmp.lt.s32.totalorder %s18, 1
      %s187 = scalar_select %p186, %s18, 1
      %p188 = scmp.lt.s32.totalorder %s19, 0
      %s189 = scalar_select %p188, %s19, 0
      %s190 = smul.addr %s187, 16
      %s191 = sadd.s32 %s189, %s190
      %s192 = smul.addr %s191, 8
      %s193 = scalar_lea.vmem %s0, %s192
      %p194 = scmp.lt.s32.totalorder %s18, 1
      %s195 = scalar_select %p194, %s18, 1
      %p196 = scmp.lt.s32.totalorder %s19, 0
      %s197 = scalar_select %p196, %s19, 0
      %s198 = smul.addr %s195, 16
      %s199 = sadd.s32 %s197, %s198
      %s200 = smul.addr %s199, 8
      %s201 = scalar_lea.vmem %s3, %s200
      %v202 = vld [vmem:[%s1] sm:$0xff]
      %v203 = vld [vmem:[%s1 + $0x8] sm:$0xff]
      %v204 = vld [vmem:[%s1 + $0x10] sm:$0xff]
      %v205 = vld [vmem:[%s1 + $0x18] sm:$0xff]
      %v206 = vld [vmem:[%s1 + $0x20] sm:$0xff]
      %v207 = vld [vmem:[%s1 + $0x28] sm:$0xff]
      %v208 = vld [vmem:[%s1 + $0x30] sm:$0xff]
      %v209 = vld [vmem:[%s1 + $0x38] sm:$0xff]
      %v210 = vld [vmem:[%s1 + $0x40] sm:$0xff]
      %v211 = vld [vmem:[%s1 + $0x48] sm:$0xff]
      %v212 = vld [vmem:[%s1 + $0x50] sm:$0xff]
      %v213 = vld [vmem:[%s1 + $0x58] sm:$0xff]
      %v214 = vld [vmem:[%s1 + $0x60] sm:$0xff]
      %v215 = vld [vmem:[%s1 + $0x68] sm:$0xff]
      %v216 = vld [vmem:[%s1 + $0x70] sm:$0xff]
      %v217 = vld [vmem:[%s1 + $0x78] sm:$0xff]
      %v218 = vld [vmem:[%s193] sm:$0xff]
      %v219 = vld [vmem:[%s193 + $0x8] sm:$0xff]
      %v220 = vld [vmem:[%s193 + $0x10] sm:$0xff]
      %v221 = vld [vmem:[%s193 + $0x18] sm:$0xff]
      %v222 = vld [vmem:[%s193 + $0x20] sm:$0xff]
      %v223 = vld [vmem:[%s193 + $0x28] sm:$0xff]
      %v224 = vld [vmem:[%s193 + $0x30] sm:$0xff]
      %v225 = vld [vmem:[%s193 + $0x38] sm:$0xff]
      %v226 = vld [vmem:[%s193 + $0x40] sm:$0xff]
      %v227 = vld [vmem:[%s193 + $0x48] sm:$0xff]
      %v228 = vld [vmem:[%s193 + $0x50] sm:$0xff]
      %v229 = vld [vmem:[%s193 + $0x58] sm:$0xff]
      %v230 = vld [vmem:[%s193 + $0x60] sm:$0xff]
      %v231 = vld [vmem:[%s193 + $0x68] sm:$0xff]
      %v232 = vld [vmem:[%s193 + $0x70] sm:$0xff]
      %v233 = vld [vmem:[%s193 + $0x78] sm:$0xff]
      %v234 = vld [vmem:[%s2] sm:$0xff]
      %v235 = vld [vmem:[%s2 + $0x8] sm:$0xff]
      %v236 = vld [vmem:[%s2 + $0x10] sm:$0xff]
      %v237 = vld [vmem:[%s2 + $0x18] sm:$0xff]
      %v238 = vld [vmem:[%s2 + $0x20] sm:$0xff]
      %v239 = vld [vmem:[%s2 + $0x28] sm:$0xff]
      %v240 = vld [vmem:[%s2 + $0x30] sm:$0xff]
      %v241 = vld [vmem:[%s2 + $0x38] sm:$0xff]
      %v242 = vld [vmem:[%s2 + $0x40] sm:$0xff]
      %v243 = vld [vmem:[%s2 + $0x48] sm:$0xff]
      %v244 = vld [vmem:[%s2 + $0x50] sm:$0xff]
      %v245 = vld [vmem:[%s2 + $0x58] sm:$0xff]
      %v246 = vld [vmem:[%s2 + $0x60] sm:$0xff]
      %v247 = vld [vmem:[%s2 + $0x68] sm:$0xff]
      %v248 = vld [vmem:[%s2 + $0x70] sm:$0xff]
      %v249 = vld [vmem:[%s2 + $0x78] sm:$0xff]
      %251 = vset.pattern.permute.xlu0 0
      %252 = vperm.xlu0 %251, %v234
      %v253 = vpop.permute.xlu0 %252
      %256 = vset.pattern.permute.xlu0 0
      %257 = vperm.xlu0 %256, %v235
      %v258 = vpop.permute.xlu0 %257
      %261 = vset.pattern.permute.xlu0 0
      %262 = vperm.xlu0 %261, %v236
      %v263 = vpop.permute.xlu0 %262
      %266 = vset.pattern.permute.xlu0 0
      %267 = vperm.xlu0 %266, %v237
      %v268 = vpop.permute.xlu0 %267
      %271 = vset.pattern.permute.xlu0 0
      %272 = vperm.xlu0 %271, %v238
      %v273 = vpop.permute.xlu0 %272
      %276 = vset.pattern.permute.xlu0 0
      %277 = vperm.xlu0 %276, %v239
      %v278 = vpop.permute.xlu0 %277
      %281 = vset.pattern.permute.xlu0 0
      %282 = vperm.xlu0 %281, %v240
      %v283 = vpop.permute.xlu0 %282
      %286 = vset.pattern.permute.xlu0 0
      %287 = vperm.xlu0 %286, %v241
      %v288 = vpop.permute.xlu0 %287
      %291 = vset.pattern.permute.xlu0 0
      %292 = vperm.xlu0 %291, %v242
      %v293 = vpop.permute.xlu0 %292
      %296 = vset.pattern.permute.xlu0 0
      %297 = vperm.xlu0 %296, %v243
      %v298 = vpop.permute.xlu0 %297
      %301 = vset.pattern.permute.xlu0 0
      %302 = vperm.xlu0 %301, %v244
      %v303 = vpop.permute.xlu0 %302
      %306 = vset.pattern.permute.xlu0 0
      %307 = vperm.xlu0 %306, %v245
      %v308 = vpop.permute.xlu0 %307
      %311 = vset.pattern.permute.xlu0 0
      %312 = vperm.xlu0 %311, %v246
      %v313 = vpop.permute.xlu0 %312
      %316 = vset.pattern.permute.xlu0 0
      %317 = vperm.xlu0 %316, %v247
      %v318 = vpop.permute.xlu0 %317
      %321 = vset.pattern.permute.xlu0 0
      %322 = vperm.xlu0 %321, %v248
      %v323 = vpop.permute.xlu0 %322
      %326 = vset.pattern.permute.xlu0 0
      %327 = vperm.xlu0 %326, %v249
      %v328 = vpop.permute.xlu0 %327
      %330 = vmatprep.subr.mxu0 0.0
      %331 = vmatpush1.msra.mxu0 %v218
      %332 = vmatprep.subr.mxu0 0.0
      %333 = vmatpush1.msra.mxu0 %v219
      %334 = vmatprep.subr.mxu0 0.0
      %335 = vmatpush1.msra.mxu0 %v220
      %336 = vmatprep.subr.mxu0 0.0
      %337 = vmatpush1.msra.mxu0 %v221
      %338 = vmatprep.subr.mxu0 0.0
      %339 = vmatpush1.msra.mxu0 %v222
      %340 = vmatprep.subr.mxu0 0.0
      %341 = vmatpush1.msra.mxu0 %v223
      %342 = vmatprep.subr.mxu0 0.0
      %343 = vmatpush1.msra.mxu0 %v224
      %344 = vmatprep.subr.mxu0 0.0
      %345 = vmatpush1.msra.mxu0 %v225
      %346 = vmatprep.subr.mxu0 0.0
      %347 = vmatpush1.msra.mxu0 %v226
      %348 = vmatprep.subr.mxu0 0.0
      %349 = vmatpush1.msra.mxu0 %v227
      %350 = vmatprep.subr.mxu0 0.0
      %351 = vmatpush1.msra.mxu0 %v228
      %352 = vmatprep.subr.mxu0 0.0
      %353 = vmatpush1.msra.mxu0 %v229
      %354 = vmatprep.subr.mxu0 0.0
      %355 = vmatpush1.msra.mxu0 %v230
      %356 = vmatprep.subr.mxu0 0.0
      %357 = vmatpush1.msra.mxu0 %v231
      %358 = vmatprep.subr.mxu0 0.0
      %359 = vmatpush1.msra.mxu0 %v232
      %360 = vmatprep.subr.mxu0 0.0
      %361 = vmatpush1.msra.mxu0 %v233
      %362 = vmatprep.subr.mxu0 0.0
      %363 = vmatpush1.msra.mxu0 0.0
      %364 = vmatprep.subr.mxu0 0.0
      %365 = vmatpush1.msra.mxu0 0.0
      %366 = vmatprep.subr.mxu0 0.0
      %367 = vmatpush1.msra.mxu0 0.0
      %368 = vmatprep.subr.mxu0 0.0
      %369 = vmatpush1.msra.mxu0 0.0
      %370 = vmatprep.subr.mxu0 0.0
      %371 = vmatpush1.msra.mxu0 0.0
      %372 = vmatprep.subr.mxu0 0.0
      %373 = vmatpush1.msra.mxu0 0.0
      %374 = vmatprep.subr.mxu0 0.0
      %375 = vmatpush1.msra.mxu0 0.0
      %376 = vmatprep.subr.mxu0 0.0
      %377 = vmatpush1.msra.mxu0 0.0
      %378 = vmatprep.subr.mxu0 0.0
      %379 = vmatpush1.msra.mxu0 0.0
      %380 = vmatprep.subr.mxu0 0.0
      %381 = vmatpush1.msra.mxu0 0.0
      %382 = vmatprep.subr.mxu0 0.0
      %383 = vmatpush1.msra.mxu0 0.0
      %384 = vmatprep.subr.mxu0 0.0
      %385 = vmatpush1.msra.mxu0 0.0
      %386 = vmatprep.subr.mxu0 0.0
      %387 = vmatpush1.msra.mxu0 0.0
      %388 = vmatprep.subr.mxu0 0.0
      %389 = vmatpush1.msra.mxu0 0.0
      %390 = vmatprep.subr.mxu0 0.0
      %391 = vmatpush1.msra.mxu0 0.0
      %392 = vmatprep.subr.mxu0 0.0
      %393 = vmatpush1.msra.mxu0 0.0
      %394 = vmatprep.mubr.f32.mxu0 0.0
      %395 = vmatmul.mubr.f32.gmra.mrb[0].mxu0 %v202
      %v396 = vpop.f32.mrb[0].mxu0
      %v397 = vadd.f32 %v253, %v396
      %v398 = vpop.f32.mrb[0].mxu0
      %399 = vmatprep.mubr.f32.mxu0 0.0
      %400 = vmatmul.mubr.f32.gmra.mrb[0].mxu0 %v203
      %v401 = vpop.f32.mrb[0].mxu0
      %v402 = vadd.f32 %v258, %v401
      %v403 = vpop.f32.mrb[0].mxu0
      %404 = vmatprep.mubr.f32.mxu0 0.0
      %405 = vmatmul.mubr.f32.gmra.mrb[0].mxu0 %v204
      %v406 = vpop.f32.mrb[0].mxu0
      %v407 = vadd.f32 %v263, %v406
      %v408 = vpop.f32.mrb[0].mxu0
      %409 = vmatprep.mubr.f32.mxu0 0.0
      %410 = vmatmul.mubr.f32.gmra.mrb[0].mxu0 %v205
      %v411 = vpop.f32.mrb[0].mxu0
      %v412 = vadd.f32 %v268, %v411
      %v413 = vpop.f32.mrb[0].mxu0
      %414 = vmatprep.mubr.f32.mxu0 0.0
      %415 = vmatmul.mubr.f32.gmra.mrb[0].mxu0 %v206
      %v416 = vpop.f32.mrb[0].mxu0
      %v417 = vadd.f32 %v273, %v416
      %v418 = vpop.f32.mrb[0].mxu0
      %419 = vmatprep.mubr.f32.mxu0 0.0
      %420 = vmatmul.mubr.f32.gmra.mrb[0].mxu0 %v207
      %v421 = vpop.f32.mrb[0].mxu0
      %v422 = vadd.f32 %v278, %v421
      %v423 = vpop.f32.mrb[0].mxu0
      %424 = vmatprep.mubr.f32.mxu0 0.0
      %425 = vmatmul.mubr.f32.gmra.mrb[0].mxu0 %v208
      %v426 = vpop.f32.mrb[0].mxu0
      %v427 = vadd.f32 %v283, %v426
      %v428 = vpop.f32.mrb[0].mxu0
      %429 = vmatprep.mubr.f32.mxu0 0.0
      %430 = vmatmul.mubr.f32.gmra.mrb[0].mxu0 %v209
      %v431 = vpop.f32.mrb[0].mxu0
      %v432 = vadd.f32 %v288, %v431
      %v433 = vpop.f32.mrb[0].mxu0
      %434 = vmatprep.mubr.f32.mxu0 0.0
      %435 = vmatmul.mubr.f32.gmra.mrb[0].mxu0 %v210
      %v436 = vpop.f32.mrb[0].mxu0
      %v437 = vadd.f32 %v293, %v436
      %v438 = vpop.f32.mrb[0].mxu0
      %439 = vmatprep.mubr.f32.mxu0 0.0
      %440 = vmatmul.mubr.f32.gmra.mrb[0].mxu0 %v211
      %v441 = vpop.f32.mrb[0].mxu0
      %v442 = vadd.f32 %v298, %v441
      %v443 = vpop.f32.mrb[0].mxu0
      %444 = vmatprep.mubr.f32.mxu0 0.0
      %445 = vmatmul.mubr.f32.gmra.mrb[0].mxu0 %v212
      %v446 = vpop.f32.mrb[0].mxu0
      %v447 = vadd.f32 %v303, %v446
      %v448 = vpop.f32.mrb[0].mxu0
      %449 = vmatprep.mubr.f32.mxu0 0.0
      %450 = vmatmul.mubr.f32.gmra.mrb[0].mxu0 %v213
      %v451 = vpop.f32.mrb[0].mxu0
      %v452 = vadd.f32 %v308, %v451
      %v453 = vpop.f32.mrb[0].mxu0
      %454 = vmatprep.mubr.f32.mxu0 0.0
      %455 = vmatmul.mubr.f32.gmra.mrb[0].mxu0 %v214
      %v456 = vpop.f32.mrb[0].mxu0
      %v457 = vadd.f32 %v313, %v456
      %v458 = vpop.f32.mrb[0].mxu0
      %459 = vmatprep.mubr.f32.mxu0 0.0
      %460 = vmatmul.mubr.f32.gmra.mrb[0].mxu0 %v215
      %v461 = vpop.f32.mrb[0].mxu0
      %v462 = vadd.f32 %v318, %v461
      %v463 = vpop.f32.mrb[0].mxu0
      %464 = vmatprep.mubr.f32.mxu0 0.0
      %465 = vmatmul.mubr.f32.gmra.mrb[0].mxu0 %v216
      %v466 = vpop.f32.mrb[0].mxu0
      %v467 = vadd.f32 %v323, %v466
      %v468 = vpop.f32.mrb[0].mxu0
      %469 = vmatprep.mubr.f32.mxu0 0.0
      %470 = vmatmul.mubr.f32.gmra.mrb[0].mxu0 %v217
      %v471 = vpop.f32.mrb[0].mxu0
      %v472 = vadd.f32 %v328, %v471
      %v473 = vpop.f32.mrb[0].mxu0
      %474 = vdwg.mxu0
      %vm475 = vcmask 130048
      %v476 = vsel %vm475, %v397, 0.0
      %v477 = vsel %vm475, %v402, 0.0
      %v478 = vadd.f32 %v476, %v477
      %v479 = vsel %vm475, %v407, 0.0
      %v480 = vadd.f32 %v478, %v479
      %v481 = vsel %vm475, %v412, 0.0
      %v482 = vadd.f32 %v480, %v481
      %v483 = vsel %vm475, %v417, 0.0
      %v484 = vadd.f32 %v482, %v483
      %v485 = vsel %vm475, %v422, 0.0
      %v486 = vadd.f32 %v484, %v485
      %v487 = vsel %vm475, %v427, 0.0
      %v488 = vadd.f32 %v486, %v487
      %v489 = vsel %vm475, %v432, 0.0
      %v490 = vadd.f32 %v488, %v489
      %v491 = vsel %vm475, %v437, 0.0
      %v492 = vadd.f32 %v490, %v491
      %v493 = vsel %vm475, %v442, 0.0
      %v494 = vadd.f32 %v492, %v493
      %v495 = vsel %vm475, %v447, 0.0
      %v496 = vadd.f32 %v494, %v495
      %v497 = vsel %vm475, %v452, 0.0
      %v498 = vadd.f32 %v496, %v497
      %v499 = vsel %vm475, %v457, 0.0
      %v500 = vadd.f32 %v498, %v499
      %v501 = vsel %vm475, %v462, 0.0
      %v502 = vadd.f32 %v500, %v501
      %v503 = vsel %vm475, %v467, 0.0
      %v504 = vadd.f32 %v502, %v503
      %v505 = vsel %vm475, %v472, 0.0
      %v506 = vadd.f32 %v504, %v505
      %v507 = vrot.slane %v506, 4
      %v508 = vadd.f32 %v506, %v507
      %v509 = vrot.slane %v508, 2
      %v510 = vadd.f32 %v508, %v509
      %v511 = vrot.slane %v510, 1
      %v512 = vadd.f32 %v510, %v511
      %v513 = vmul.f32 %v512, 0.03125
      %v514 = vmul.f32 %v397, %v397
      %v515 = vmul.f32 %v402, %v402
      %v516 = vmul.f32 %v407, %v407
      %v517 = vmul.f32 %v412, %v412
      %v518 = vmul.f32 %v417, %v417
      %v519 = vmul.f32 %v422, %v422
      %v520 = vmul.f32 %v427, %v427
      %v521 = vmul.f32 %v432, %v432
      %v522 = vmul.f32 %v437, %v437
      %v523 = vmul.f32 %v442, %v442
      %v524 = vmul.f32 %v447, %v447
      %v525 = vmul.f32 %v452, %v452
      %v526 = vmul.f32 %v457, %v457
      %v527 = vmul.f32 %v462, %v462
      %v528 = vmul.f32 %v467, %v467
      %v529 = vmul.f32 %v472, %v472
      %v530 = vsel %vm475, %v514, 0.0
      %v531 = vsel %vm475, %v515, 0.0
      %v532 = vadd.f32 %v530, %v531
      %v533 = vsel %vm475, %v516, 0.0
      %v534 = vadd.f32 %v532, %v533
      %v535 = vsel %vm475, %v517, 0.0
      %v536 = vadd.f32 %v534, %v535
      %v537 = vsel %vm475, %v518, 0.0
      %v538 = vadd.f32 %v536, %v537
      %v539 = vsel %vm475, %v519, 0.0
      %v540 = vadd.f32 %v538, %v539
      %v541 = vsel %vm475, %v520, 0.0
      %v542 = vadd.f32 %v540, %v541
      %v543 = vsel %vm475, %v521, 0.0
      %v544 = vadd.f32 %v542, %v543
      %v545 = vsel %vm475, %v522, 0.0
      %v546 = vadd.f32 %v544, %v545
      %v547 = vsel %vm475, %v523, 0.0
      %v548 = vadd.f32 %v546, %v547
      %v549 = vsel %vm475, %v524, 0.0
      %v550 = vadd.f32 %v548, %v549
      %v551 = vsel %vm475, %v525, 0.0
      %v552 = vadd.f32 %v550, %v551
      %v553 = vsel %vm475, %v526, 0.0
      %v554 = vadd.f32 %v552, %v553
      %v555 = vsel %vm475, %v527, 0.0
      %v556 = vadd.f32 %v554, %v555
      %v557 = vsel %vm475, %v528, 0.0
      %v558 = vadd.f32 %v556, %v557
      %v559 = vsel %vm475, %v529, 0.0
      %v560 = vadd.f32 %v558, %v559
      %v561 = vrot.slane %v560, 4
      %v562 = vadd.f32 %v560, %v561
      %v563 = vrot.slane %v562, 2
      %v564 = vadd.f32 %v562, %v563
      %v565 = vrot.slane %v564, 1
      %v566 = vadd.f32 %v564, %v565
      %v567 = vmul.f32 %v566, 0.03125
      %v568 = vmul.f32 %v513, %v513
      %v569 = vsub.f32 %v567, %v568
      %v570 = vadd.f32 %v569, 1e-05
      %v571 = vrsqrt.pop %v570
      %v572 = vsub.f32 %v397, %v513
      %v573 = vsub.f32 %v402, %v513
      %v574 = vsub.f32 %v407, %v513
      %v575 = vsub.f32 %v412, %v513
      %v576 = vsub.f32 %v417, %v513
      %v577 = vsub.f32 %v422, %v513
      %v578 = vsub.f32 %v427, %v513
      %v579 = vsub.f32 %v432, %v513
      %v580 = vsub.f32 %v437, %v513
      %v581 = vsub.f32 %v442, %v513
      %v582 = vsub.f32 %v447, %v513
      %v583 = vsub.f32 %v452, %v513
      %v584 = vsub.f32 %v457, %v513
      %v585 = vsub.f32 %v462, %v513
      %v586 = vsub.f32 %v467, %v513
      %v587 = vsub.f32 %v472, %v513
      %v588 = vmul.f32 %v572, %v571
      %v589 = vmul.f32 %v573, %v571
      %v590 = vmul.f32 %v574, %v571
      %v591 = vmul.f32 %v575, %v571
      %v592 = vmul.f32 %v576, %v571
      %v593 = vmul.f32 %v577, %v571
      %v594 = vmul.f32 %v578, %v571
      %v595 = vmul.f32 %v579, %v571
      %v596 = vmul.f32 %v580, %v571
      %v597 = vmul.f32 %v581, %v571
      %v598 = vmul.f32 %v582, %v571
      %v599 = vmul.f32 %v583, %v571
      %v600 = vmul.f32 %v584, %v571
      %v601 = vmul.f32 %v585, %v571
      %v602 = vmul.f32 %v586, %v571
      %v603 = vmul.f32 %v587, %v571
      %604 = vset.pattern.permute.xlu0 1
      %605 = vperm.xlu0 %604, %v234
      %v606 = vpop.permute.xlu0 %605
      %608 = vset.pattern.permute.xlu0 1
      %609 = vperm.xlu0 %608, %v235
      %v610 = vpop.permute.xlu0 %609
      %612 = vset.pattern.permute.xlu0 1
      %613 = vperm.xlu0 %612, %v236
      %v614 = vpop.permute.xlu0 %613
      %616 = vset.pattern.permute.xlu0 1
      %617 = vperm.xlu0 %616, %v237
      %v618 = vpop.permute.xlu0 %617
      %620 = vset.pattern.permute.xlu0 1
      %621 = vperm.xlu0 %620, %v238
      %v622 = vpop.permute.xlu0 %621
      %624 = vset.pattern.permute.xlu0 1
      %625 = vperm.xlu0 %624, %v239
      %v626 = vpop.permute.xlu0 %625
      %628 = vset.pattern.permute.xlu0 1
      %629 = vperm.xlu0 %628, %v240
      %v630 = vpop.permute.xlu0 %629
      %632 = vset.pattern.permute.xlu0 1
      %633 = vperm.xlu0 %632, %v241
      %v634 = vpop.permute.xlu0 %633
      %636 = vset.pattern.permute.xlu0 1
      %637 = vperm.xlu0 %636, %v242
      %v638 = vpop.permute.xlu0 %637
      %640 = vset.pattern.permute.xlu0 1
      %641 = vperm.xlu0 %640, %v243
      %v642 = vpop.permute.xlu0 %641
      %644 = vset.pattern.permute.xlu0 1
      %645 = vperm.xlu0 %644, %v244
      %v646 = vpop.permute.xlu0 %645
      %648 = vset.pattern.permute.xlu0 1
      %649 = vperm.xlu0 %648, %v245
      %v650 = vpop.permute.xlu0 %649
      %652 = vset.pattern.permute.xlu0 1
      %653 = vperm.xlu0 %652, %v246
      %v654 = vpop.permute.xlu0 %653
      %656 = vset.pattern.permute.xlu0 1
      %657 = vperm.xlu0 %656, %v247
      %v658 = vpop.permute.xlu0 %657
      %660 = vset.pattern.permute.xlu0 1
      %661 = vperm.xlu0 %660, %v248
      %v662 = vpop.permute.xlu0 %661
      %664 = vset.pattern.permute.xlu0 1
      %665 = vperm.xlu0 %664, %v249
      %v666 = vpop.permute.xlu0 %665
      %v668 = vmul.f32 %v588, %v606
      %v669 = vmul.f32 %v589, %v610
      %v670 = vmul.f32 %v590, %v614
      %v671 = vmul.f32 %v591, %v618
      %v672 = vmul.f32 %v592, %v622
      %v673 = vmul.f32 %v593, %v626
      %v674 = vmul.f32 %v594, %v630
      %v675 = vmul.f32 %v595, %v634
      %v676 = vmul.f32 %v596, %v638
      %v677 = vmul.f32 %v597, %v642
      %v678 = vmul.f32 %v598, %v646
      %v679 = vmul.f32 %v599, %v650
      %v680 = vmul.f32 %v600, %v654
      %v681 = vmul.f32 %v601, %v658
      %v682 = vmul.f32 %v602, %v662
      %v683 = vmul.f32 %v603, %v666
      %684 = vset.pattern.permute.xlu0 2
      %685 = vperm.xlu0 %684, %v234
      %v686 = vpop.permute.xlu0 %685
      %688 = vset.pattern.permute.xlu0 2
      %689 = vperm.xlu0 %688, %v235
      %v690 = vpop.permute.xlu0 %689
      %692 = vset.pattern.permute.xlu0 2
      %693 = vperm.xlu0 %692, %v236
      %v694 = vpop.permute.xlu0 %693
      %696 = vset.pattern.permute.xlu0 2
      %697 = vperm.xlu0 %696, %v237
      %v698 = vpop.permute.xlu0 %697
      %700 = vset.pattern.permute.xlu0 2
      %701 = vperm.xlu0 %700, %v238
      %v702 = vpop.permute.xlu0 %701
      %704 = vset.pattern.permute.xlu0 2
      %705 = vperm.xlu0 %704, %v239
      %v706 = vpop.permute.xlu0 %705
      %708 = vset.pattern.permute.xlu0 2
      %709 = vperm.xlu0 %708, %v240
      %v710 = vpop.permute.xlu0 %709
      %712 = vset.pattern.permute.xlu0 2
      %713 = vperm.xlu0 %712, %v241
      %v714 = vpop.permute.xlu0 %713
      %716 = vset.pattern.permute.xlu0 2
      %717 = vperm.xlu0 %716, %v242
      %v718 = vpop.permute.xlu0 %717
      %720 = vset.pattern.permute.xlu0 2
      %721 = vperm.xlu0 %720, %v243
      %v722 = vpop.permute.xlu0 %721
      %724 = vset.pattern.permute.xlu0 2
      %725 = vperm.xlu0 %724, %v244
      %v726 = vpop.permute.xlu0 %725
      %728 = vset.pattern.permute.xlu0 2
      %729 = vperm.xlu0 %728, %v245
      %v730 = vpop.permute.xlu0 %729
      %732 = vset.pattern.permute.xlu0 2
      %733 = vperm.xlu0 %732, %v246
      %v734 = vpop.permute.xlu0 %733
      %736 = vset.pattern.permute.xlu0 2
      %737 = vperm.xlu0 %736, %v247
      %v738 = vpop.permute.xlu0 %737
      %740 = vset.pattern.permute.xlu0 2
      %741 = vperm.xlu0 %740, %v248
      %v742 = vpop.permute.xlu0 %741
      %744 = vset.pattern.permute.xlu0 2
      %745 = vperm.xlu0 %744, %v249
      %v746 = vpop.permute.xlu0 %745
      %v748 = vadd.f32 %v668, %v686
      %v749 = vadd.f32 %v669, %v690
      %v750 = vadd.f32 %v670, %v694
      %v751 = vadd.f32 %v671, %v698
      %v752 = vadd.f32 %v672, %v702
      %v753 = vadd.f32 %v673, %v706
      %v754 = vadd.f32 %v674, %v710
      %v755 = vadd.f32 %v675, %v714
      %v756 = vadd.f32 %v676, %v718
      %v757 = vadd.f32 %v677, %v722
      %v758 = vadd.f32 %v678, %v726
      %v759 = vadd.f32 %v679, %v730
      %v760 = vadd.f32 %v680, %v734
      %v761 = vadd.f32 %v681, %v738
      %v762 = vadd.f32 %v682, %v742
      %v763 = vadd.f32 %v683, %v746
      %764 = vst.msk [vmem:[%s201] sm:$0xff] %vm475, %v748
      %765 = vst.msk [vmem:[%s201 + $0x8] sm:$0xff] %vm475, %v749
      %766 = vst.msk [vmem:[%s201 + $0x10] sm:$0xff] %vm475, %v750
      %767 = vst.msk [vmem:[%s201 + $0x18] sm:$0xff] %vm475, %v751
      %768 = vst.msk [vmem:[%s201 + $0x20] sm:$0xff] %vm475, %v752
      %769 = vst.msk [vmem:[%s201 + $0x28] sm:$0xff] %vm475, %v753
      %770 = vst.msk [vmem:[%s201 + $0x30] sm:$0xff] %vm475, %v754
      %771 = vst.msk [vmem:[%s201 + $0x38] sm:$0xff] %vm475, %v755
      %772 = vst.msk [vmem:[%s201 + $0x40] sm:$0xff] %vm475, %v756
      %773 = vst.msk [vmem:[%s201 + $0x48] sm:$0xff] %vm475, %v757
      %774 = vst.msk [vmem:[%s201 + $0x50] sm:$0xff] %vm475, %v758
      %775 = vst.msk [vmem:[%s201 + $0x58] sm:$0xff] %vm475, %v759
      %776 = vst.msk [vmem:[%s201 + $0x60] sm:$0xff] %vm475, %v760
      %777 = vst.msk [vmem:[%s201 + $0x68] sm:$0xff] %vm475, %v761
      %778 = vst.msk [vmem:[%s201 + $0x70] sm:$0xff] %vm475, %v762
      %779 = vst.msk [vmem:[%s201 + $0x78] sm:$0xff] %vm475, %v763
      %p780 = scmp.lt.s32.totalorder %s18, 1
      %s781 = scalar_select %p780, %s18, 1
      %p782 = scmp.lt.s32.totalorder %s19, 0
      %s783 = scalar_select %p782, %s19, 0
      %s784 = smul.addr %s781, 16
      %s785 = sadd.s32 %s783, %s784
      %s786 = smul.addr %s785, 8
      %s787 = scalar_lea.vmem %s3, %s786
      // Predicated region
      $region33: #{tpu_custom_call.1} parent=31 // pred_check
        %p788 = pneg %p116
      $region34: #{tpu_custom_call.1} parent=31 // pred_check_branch
        %790 = sbr.rel (%p788) target = $region36
      $region35: #{tpu_custom_call.1} parent=31 // pred_region
        _
      $region36: #{tpu_custom_call.1} parent=31 // pred_fallthru
        _
    $region32: #{tpu_custom_call.1} parent=5 // pred_fallthru
      _
    %p791 = scmp.le.s32.totalorder 2, %s9
    // Predicated region
    $region37: #{tpu_custom_call.1} parent=5 // pred_check
      %p792 = pneg %p791
    $region38: #{tpu_custom_call.1} parent=5 // pred_check_branch
      %794 = sbr.rel (%p792) target = $region40
    $region39: #{tpu_custom_call.1} parent=5 // pred_region
      %s795 = ssub.s32 %s9, 2
      // Predicated region
      $region41: #{tpu_custom_call.1} parent=39 // pred_check
        %p796 = pneg %p122
      $region42: #{tpu_custom_call.1} parent=39 // pred_check_branch
        %798 = sbr.rel (%p796) target = $region44
      $region43: #{tpu_custom_call.1} parent=39 // pred_region
        %p799 = scmp.lt.s32.totalorder %s20, 1
        %s800 = scalar_select %p799, %s20, 1
        %p801 = scmp.lt.s32.totalorder %s21, 0
        %s802 = scalar_select %p801, %s21, 0
        %s803 = smul.addr %s800, 16
        %s804 = sadd.s32 %s802, %s803
        %s805 = smul.addr %s804, 8
        %s806 = scalar_lea.vmem %s3, %s805
      $region44: #{tpu_custom_call.1} parent=39 // pred_fallthru
        _
    $region40: #{tpu_custom_call.1} parent=5 // pred_fallthru
      _
  $region6: #{tpu_custom_call.1} parent=0 // loop_footer
    %s13 = sadd.s32 1, %s9
  $region7: #{tpu_custom_call.1} parent=0 // loop_footer_branch
    %8 = sbr.rel target = $region3
  $region8: #{tpu_custom_call.1} parent=0 // loop_exit
    _

// kernel: tpu_custom_call.1
$region0: #{tpu_custom_call.1}
  #allocation0 [shape = 'u32[]', space=smem, size = 0x4, offset = 0x4, fixed_abs, tag = 'smem constant byte address 0x4 - core index']
  #allocation1 [shape = 'u32[144,128]{1,0:T(1,128)}', space=vmem, size = 0x12000, scoped, tag = 'internal scratch']
  %s0 = inlined_call_operand.vmem [shape: f32[2,128,16], index: 0, kind: input, shape index: {}]
  %s1 = inlined_call_operand.vmem [shape: f32[128,128], index: 1, kind: input, shape index: {}]
  %s2 = inlined_call_operand.vmem [shape: f32[128,8], index: 2, kind: input, shape index: {}]
  %s3 = inlined_call_operand.vmem [shape: f32[2,128,16], index: 3, kind: output, shape index: {}]
  %s4 = sld [smem:[#allocation0]]
  $region45: #{tpu_custom_call.1} parent=0
    _
  %s6 = ssub.s32 1, %s4
  %s7 = scalar_select 0, %s6, %s4
  loop: start=0, step=1, limit=4
  $region2: #{tpu_custom_call.1} parent=0 // loop_pre_header
    _
  $region3: #{tpu_custom_call.1} parent=0 // loop_header
    %s9 = sphi 0, %s13
    %p10 = scmp.ge.s32.totalorder %s9, 4
    %s16 = sphi 0, %s28
    %s17 = sphi 0, %s24
    %s18 = sphi 0, %s16
    %s19 = sphi 0, %s17
    %s20 = sphi 0, %s18
    %s21 = sphi 0, %s19
    %s33 = sphi 0, %s35
    %s36 = sphi 0, %s33
    %s37 = sphi 0, %s36
    %s53 = sphi 0, %s37
    %s57 = sphi 0, %s57
    %s59 = sphi 0, %s57
    %s60 = sphi 0, %s59
    %s74 = sphi 0, %s60
    %s78 = sphi 0, %s78
    %s80 = sphi 0, %s78
    %s81 = sphi 0, %s80
    %s95 = sphi 0, %s81
    %s103 = sphi 0, %s105
    %s106 = sphi 0, %s103
    %s107 = sphi 0, %s106
    %s123 = sphi 0, %s107
  $region4: #{tpu_custom_call.1} parent=0 // loop_header_branch
    %12 = sbr.rel (%p10) target = $region8
  $region5: #{tpu_custom_call.1} parent=0 // loop_body
    %s14 = ssub.s32 %s9, 1
    %s15 = ssub.s32 %s9, 2
    %s22 = sadd.s32 1, %s17
    %p23 = scmp.ge.s32.totalorder %s22, 1
    %s24 = scalar_select %p23, 0, %s22
    %s25 = sadd.s32 1, %s16
    %s26 = scalar_select %p23, %s25, %s16
    %p27 = scmp.ge.s32.totalorder %s26, 2
    %s28 = scalar_select %p27, 0, %s26
    %s29 = ssub.s32 %s16, %s28
    %s30 = ssub.s32 %s17, %s24
    %s31 = sor.u32 %s29, %s30
    %p32 = scmp.eq.s32.totalorder %s31, 0
    %s34 = sadd.s32 %s33, 1
    %s35 = scalar_select %p32, %s33, %s34
    %p38 = pneg %p32
    %p39 = scmp.eq.s32.totalorder %s9, 1
    %p40 = por %p38, %p39
    %p41 = scmp.ne.s32.totalorder %s33, %s36
    %p42 = scmp.eq.s32.totalorder %s9, 0
    %p43 = por %p41, %p42
    %p44 = scmp.ne.s32.totalorder %s33, %s36
    %p45 = scmp.eq.s32.totalorder %s14, 1
    %p46 = por %p44, %p45
    %p47 = scmp.ne.s32.totalorder %s36, %s37
    %p48 = scmp.eq.s32.totalorder %s14, 0
    %p49 = por %p47, %p48
    %p50 = scmp.ne.s32.totalorder %s36, %s37
    %p51 = scmp.eq.s32.totalorder %s15, 1
    %p52 = por %p50, %p51
    %p54 = scmp.ne.s32.totalorder %s37, %s53
    %p55 = scmp.eq.s32.totalorder %s15, 0
    %p56 = por %p54, %p55
    %s58 = sadd.s32 %s57, 1
    %p61 = scmp.eq.s32.totalorder %s9, 1
    %p62 = scmp.ne.s32.totalorder %s57, %s59
    %p63 = scmp.eq.s32.totalorder %s9, 0
    %p64 = por %p62, %p63
    %p65 = scmp.ne.s32.totalorder %s57, %s59
    %p66 = scmp.eq.s32.totalorder %s14, 1
    %p67 = por %p65, %p66
    %p68 = scmp.ne.s32.totalorder %s59, %s60
    %p69 = scmp.eq.s32.totalorder %s14, 0
    %p70 = por %p68, %p69
    %p71 = scmp.ne.s32.totalorder %s59, %s60
    %p72 = scmp.eq.s32.totalorder %s15, 1
    %p73 = por %p71, %p72
    %p75 = scmp.ne.s32.totalorder %s60, %s74
    %p76 = scmp.eq.s32.totalorder %s15, 0
    %p77 = por %p75, %p76
    %s79 = sadd.s32 %s78, 1
    %p82 = scmp.eq.s32.totalorder %s9, 1
    %p83 = scmp.ne.s32.totalorder %s78, %s80
    %p84 = scmp.eq.s32.totalorder %s9, 0
    %p85 = por %p83, %p84
    %p86 = scmp.ne.s32.totalorder %s78, %s80
    %p87 = scmp.eq.s32.totalorder %s14, 1
    %p88 = por %p86, %p87
    %p89 = scmp.ne.s32.totalorder %s80, %s81
    %p90 = scmp.eq.s32.totalorder %s14, 0
    %p91 = por %p89, %p90
    %p92 = scmp.ne.s32.totalorder %s80, %s81
    %p93 = scmp.eq.s32.totalorder %s15, 1
    %p94 = por %p92, %p93
    %p96 = scmp.ne.s32.totalorder %s81, %s95
    %p97 = scmp.eq.s32.totalorder %s15, 0
    %p98 = por %p96, %p97
    %s99 = ssub.s32 %s16, %s28
    %s100 = ssub.s32 %s17, %s24
    %s101 = sor.u32 %s99, %s100
    %p102 = scmp.eq.s32.totalorder %s101, 0
    %s104 = sadd.s32 %s103, 1
    %s105 = scalar_select %p102, %s103, %s104
    %p108 = pneg %p102
    %p109 = scmp.eq.s32.totalorder %s9, 1
    %p110 = por %p108, %p109
    %p111 = scmp.ne.s32.totalorder %s103, %s106
    %p112 = scmp.eq.s32.totalorder %s9, 0
    %p113 = por %p111, %p112
    %p114 = scmp.ne.s32.totalorder %s103, %s106
    %p115 = scmp.eq.s32.totalorder %s14, 1
    %p116 = por %p114, %p115
    %p117 = scmp.ne.s32.totalorder %s106, %s107
    %p118 = scmp.eq.s32.totalorder %s14, 0
    %p119 = por %p117, %p118
    %p120 = scmp.ne.s32.totalorder %s106, %s107
    %p121 = scmp.eq.s32.totalorder %s15, 1
    %p122 = por %p120, %p121
    %p124 = scmp.ne.s32.totalorder %s107, %s123
    %p125 = scmp.eq.s32.totalorder %s15, 0
    %p126 = por %p124, %p125
    %p127 = scmp.le.s32.totalorder 1, %s9
    %p128 = scmp.lt.s32.totalorder %s9, 3
    %p129 = pnand %p127, %p128
    %p130 = pneg %p129
    // Predicated region
    $region9: #{tpu_custom_call.1} parent=5 // pred_check
      _
    $region10: #{tpu_custom_call.1} parent=5 // pred_check_branch
      %132 = sbr.rel (%p129) target = $region12
    $region11: #{tpu_custom_call.1} parent=5 // pred_region
      %s133 = ssub.s32 %s9, 1
      // Predicated region
      $region13: #{tpu_custom_call.1} parent=11 // pred_check
        %p134 = pneg %p70
      $region14: #{tpu_custom_call.1} parent=11 // pred_check_branch
        %136 = sbr.rel (%p134) target = $region16
      $region15: #{tpu_custom_call.1} parent=11 // pred_region
        _
      $region16: #{tpu_custom_call.1} parent=11 // pred_fallthru
        _
      // Predicated region
      $region17: #{tpu_custom_call.1} parent=11 // pred_check
        %p137 = pneg %p91
      $region18: #{tpu_custom_call.1} parent=11 // pred_check_branch
        %139 = sbr.rel (%p137) target = $region20
      $region19: #{tpu_custom_call.1} parent=11 // pred_region
        _
      $region20: #{tpu_custom_call.1} parent=11 // pred_fallthru
        _
    $region12: #{tpu_custom_call.1} parent=5 // pred_fallthru
      _
    %p140 = scmp.lt.s32.totalorder %s9, 2
    // Predicated region
    $region21: #{tpu_custom_call.1} parent=5 // pred_check
      %p141 = pneg %p140
    $region22: #{tpu_custom_call.1} parent=5 // pred_check_branch
      %143 = sbr.rel (%p141) target = $region24
    $region23: #{tpu_custom_call.1} parent=5 // pred_region
      // Predicated region
      $region25: #{tpu_custom_call.1} parent=23 // pred_check
        %p144 = pneg %p43
      $region26: #{tpu_custom_call.1} parent=23 // pred_check_branch
        %146 = sbr.rel (%p144) target = $region28
      $region27: #{tpu_custom_call.1} parent=23 // pred_region
        %p147 = scmp.lt.s32.totalorder %s16, 1
        %s148 = scalar_select %p147, %s16, 1
        %p149 = scmp.lt.s32.totalorder %s17, 0
        %s150 = scalar_select %p149, %s17, 0
        %s151 = smul.addr %s148, 16
        %s152 = sadd.s32 %s150, %s151
        %s153 = smul.addr %s152, 8
        %s154 = scalar_lea.vmem %s0, %s153
      $region28: #{tpu_custom_call.1} parent=23 // pred_fallthru
        _
    $region24: #{tpu_custom_call.1} parent=5 // pred_fallthru
      _
    %p155 = scmp.le.s32.totalorder 1, %s9
    %p156 = scmp.lt.s32.totalorder %s9, 3
    %p157 = pnand %p155, %p156
    %p158 = pneg %p157
    // Predicated region
    $region29: #{tpu_custom_call.1} parent=5 // pred_check
      _
    $region30: #{tpu_custom_call.1} parent=5 // pred_check_branch
      %160 = sbr.rel (%p157) target = $region32
    $region31: #{tpu_custom_call.1} parent=5 // pred_region
      %s161 = ssub.s32 %s9, 1
      %p162 = scmp.lt.s32.totalorder %s18, 1
      %s163 = scalar_select %p162, %s18, 1
      %p164 = scmp.lt.s32.totalorder %s19, 0
      %s165 = scalar_select %p164, %s19, 0
      %s166 = smul.addr %s163, 16
      %s167 = sadd.s32 %s165, %s166
      %s168 = smul.addr %s167, 8
      %s169 = scalar_lea.vmem %s0, %s168
      %p170 = pneg %p49
      %p171 = pneg %p46
      %p172 = pneg %p70
      %p173 = pneg %p67
      %p174 = pneg %p91
      %p175 = pneg %p88
      %p176 = pneg %p119
      %p177 = pneg %p116
      %p178 = scmp.lt.s32.totalorder %s18, 1
      %s179 = scalar_select %p178, %s18, 1
      %p180 = scmp.lt.s32.totalorder %s19, 0
      %s181 = scalar_select %p180, %s19, 0
      %s182 = smul.addr %s179, 16
      %s183 = sadd.s32 %s181, %s182
      %s184 = smul.addr %s183, 8
      %s185 = scalar_lea.vmem %s3, %s184
      %p186 = scmp.lt.s32.totalorder %s18, 1
      %s187 = scalar_select %p186, %s18, 1
      %p188 = scmp.lt.s32.totalorder %s19, 0
      %s189 = scalar_select %p188, %s19, 0
      %s190 = smul.addr %s187, 16
      %s191 = sadd.s32 %s189, %s190
      %s192 = smul.addr %s191, 8
      %s193 = scalar_lea.vmem %s0, %s192
      %p194 = scmp.lt.s32.totalorder %s18, 1
      %s195 = scalar_select %p194, %s18, 1
      %p196 = scmp.lt.s32.totalorder %s19, 0
      %s197 = scalar_select %p196, %s19, 0
      %s198 = smul.addr %s195, 16
      %s199 = sadd.s32 %s197, %s198
      %s200 = smul.addr %s199, 8
      %s201 = scalar_lea.vmem %s3, %s200
      %v202 = vld [vmem:[%s1] sm:$0xff]
      %v203 = vld [vmem:[%s1 + $0x8] sm:$0xff]
      %v204 = vld [vmem:[%s1 + $0x10] sm:$0xff]
      %v205 = vld [vmem:[%s1 + $0x18] sm:$0xff]
      %v206 = vld [vmem:[%s1 + $0x20] sm:$0xff]
      %v207 = vld [vmem:[%s1 + $0x28] sm:$0xff]
      %v208 = vld [vmem:[%s1 + $0x30] sm:$0xff]
      %v209 = vld [vmem:[%s1 + $0x38] sm:$0xff]
      %v210 = vld [vmem:[%s1 + $0x40] sm:$0xff]
      %v211 = vld [vmem:[%s1 + $0x48] sm:$0xff]
      %v212 = vld [vmem:[%s1 + $0x50] sm:$0xff]
      %v213 = vld [vmem:[%s1 + $0x58] sm:$0xff]
      %v214 = vld [vmem:[%s1 + $0x60] sm:$0xff]
      %v215 = vld [vmem:[%s1 + $0x68] sm:$0xff]
      %v216 = vld [vmem:[%s1 + $0x70] sm:$0xff]
      %v217 = vld [vmem:[%s1 + $0x78] sm:$0xff]
      %v218 = vld [vmem:[%s193] sm:$0xff]
      %v219 = vld [vmem:[%s193 + $0x8] sm:$0xff]
      %v220 = vld [vmem:[%s193 + $0x10] sm:$0xff]
      %v221 = vld [vmem:[%s193 + $0x18] sm:$0xff]
      %v222 = vld [vmem:[%s193 + $0x20] sm:$0xff]
      %v223 = vld [vmem:[%s193 + $0x28] sm:$0xff]
      %v224 = vld [vmem:[%s193 + $0x30] sm:$0xff]
      %v225 = vld [vmem:[%s193 + $0x38] sm:$0xff]
      %v226 = vld [vmem:[%s193 + $0x40] sm:$0xff]
      %v227 = vld [vmem:[%s193 + $0x48] sm:$0xff]
      %v228 = vld [vmem:[%s193 + $0x50] sm:$0xff]
      %v229 = vld [vmem:[%s193 + $0x58] sm:$0xff]
      %v230 = vld [vmem:[%s193 + $0x60] sm:$0xff]
      %v231 = vld [vmem:[%s193 + $0x68] sm:$0xff]
      %v232 = vld [vmem:[%s193 + $0x70] sm:$0xff]
      %v233 = vld [vmem:[%s193 + $0x78] sm:$0xff]
      %v234 = vld [vmem:[%s2] sm:$0xff]
      %v235 = vld [vmem:[%s2 + $0x8] sm:$0xff]
      %v236 = vld [vmem:[%s2 + $0x10] sm:$0xff]
      %v237 = vld [vmem:[%s2 + $0x18] sm:$0xff]
      %v238 = vld [vmem:[%s2 + $0x20] sm:$0xff]
      %v239 = vld [vmem:[%s2 + $0x28] sm:$0xff]
      %v240 = vld [vmem:[%s2 + $0x30] sm:$0xff]
      %v241 = vld [vmem:[%s2 + $0x38] sm:$0xff]
      %v242 = vld [vmem:[%s2 + $0x40] sm:$0xff]
      %v243 = vld [vmem:[%s2 + $0x48] sm:$0xff]
      %v244 = vld [vmem:[%s2 + $0x50] sm:$0xff]
      %v245 = vld [vmem:[%s2 + $0x58] sm:$0xff]
      %v246 = vld [vmem:[%s2 + $0x60] sm:$0xff]
      %v247 = vld [vmem:[%s2 + $0x68] sm:$0xff]
      %v248 = vld [vmem:[%s2 + $0x70] sm:$0xff]
      %v249 = vld [vmem:[%s2 + $0x78] sm:$0xff]
      %251 = vset.pattern.permute.xlu0 0
      %252 = vperm.xlu0 %251, %v234
      %v253 = vpop.permute.xlu0 %252
      %256 = vset.pattern.permute.xlu0 0
      %257 = vperm.xlu0 %256, %v235
      %v258 = vpop.permute.xlu0 %257
      %261 = vset.pattern.permute.xlu0 0
      %262 = vperm.xlu0 %261, %v236
      %v263 = vpop.permute.xlu0 %262
      %266 = vset.pattern.permute.xlu0 0
      %267 = vperm.xlu0 %266, %v237
      %v268 = vpop.permute.xlu0 %267
      %271 = vset.pattern.permute.xlu0 0
      %272 = vperm.xlu0 %271, %v238
      %v273 = vpop.permute.xlu0 %272
      %276 = vset.pattern.permute.xlu0 0
      %277 = vperm.xlu0 %276, %v239
      %v278 = vpop.permute.xlu0 %277
      %281 = vset.pattern.permute.xlu0 0
      %282 = vperm.xlu0 %281, %v240
      %v283 = vpop.permute.xlu0 %282
      %286 = vset.pattern.permute.xlu0 0
      %287 = vperm.xlu0 %286, %v241
      %v288 = vpop.permute.xlu0 %287
      %291 = vset.pattern.permute.xlu0 0
      %292 = vperm.xlu0 %291, %v242
      %v293 = vpop.permute.xlu0 %292
      %296 = vset.pattern.permute.xlu0 0
      %297 = vperm.xlu0 %296, %v243
      %v298 = vpop.permute.xlu0 %297
      %301 = vset.pattern.permute.xlu0 0
      %302 = vperm.xlu0 %301, %v244
      %v303 = vpop.permute.xlu0 %302
      %306 = vset.pattern.permute.xlu0 0
      %307 = vperm.xlu0 %306, %v245
      %v308 = vpop.permute.xlu0 %307
      %311 = vset.pattern.permute.xlu0 0
      %312 = vperm.xlu0 %311, %v246
      %v313 = vpop.permute.xlu0 %312
      %316 = vset.pattern.permute.xlu0 0
      %317 = vperm.xlu0 %316, %v247
      %v318 = vpop.permute.xlu0 %317
      %321 = vset.pattern.permute.xlu0 0
      %322 = vperm.xlu0 %321, %v248
      %v323 = vpop.permute.xlu0 %322
      %326 = vset.pattern.permute.xlu0 0
      %327 = vperm.xlu0 %326, %v249
      %v328 = vpop.permute.xlu0 %327
      %330 = vmatprep.subr.mxu0 0.0
      %331 = vmatpush1.msra.mxu0 %v218
      %332 = vmatprep.subr.mxu0 0.0
      %333 = vmatpush1.msra.mxu0 %v219
      %334 = vmatprep.subr.mxu0 0.0
      %335 = vmatpush1.msra.mxu0 %v220
      %336 = vmatprep.subr.mxu0 0.0
      %337 = vmatpush1.msra.mxu0 %v221
      %338 = vmatprep.subr.mxu0 0.0
      %339 = vmatpush1.msra.mxu0 %v222
      %340 = vmatprep.subr.mxu0 0.0
      %341 = vmatpush1.msra.mxu0 %v223
      %342 = vmatprep.subr.mxu0 0.0
      %343 = vmatpush1.msra.mxu0 %v224
      %344 = vmatprep.subr.mxu0 0.0
      %345 = vmatpush1.msra.mxu0 %v225
      %346 = vmatprep.subr.mxu0 0.0
      %347 = vmatpush1.msra.mxu0 %v226
      %348 = vmatprep.subr.mxu0 0.0
      %349 = vmatpush1.msra.mxu0 %v227
      %350 = vmatprep.subr.mxu0 0.0
      %351 = vmatpush1.msra.mxu0 %v228
      %352 = vmatprep.subr.mxu0 0.0
      %353 = vmatpush1.msra.mxu0 %v229
      %354 = vmatprep.subr.mxu0 0.0
      %355 = vmatpush1.msra.mxu0 %v230
      %356 = vmatprep.subr.mxu0 0.0
      %357 = vmatpush1.msra.mxu0 %v231
      %358 = vmatprep.subr.mxu0 0.0
      %359 = vmatpush1.msra.mxu0 %v232
      %360 = vmatprep.subr.mxu0 0.0
      %361 = vmatpush1.msra.mxu0 %v233
      %362 = vmatprep.subr.mxu0 0.0
      %363 = vmatpush1.msra.mxu0 0.0
      %364 = vmatprep.subr.mxu0 0.0
      %365 = vmatpush1.msra.mxu0 0.0
      %366 = vmatprep.subr.mxu0 0.0
      %367 = vmatpush1.msra.mxu0 0.0
      %368 = vmatprep.subr.mxu0 0.0
      %369 = vmatpush1.msra.mxu0 0.0
      %370 = vmatprep.subr.mxu0 0.0
      %371 = vmatpush1.msra.mxu0 0.0
      %372 = vmatprep.subr.mxu0 0.0
      %373 = vmatpush1.msra.mxu0 0.0
      %374 = vmatprep.subr.mxu0 0.0
      %375 = vmatpush1.msra.mxu0 0.0
      %376 = vmatprep.subr.mxu0 0.0
      %377 = vmatpush1.msra.mxu0 0.0
      %378 = vmatprep.subr.mxu0 0.0
      %379 = vmatpush1.msra.mxu0 0.0
      %380 = vmatprep.subr.mxu0 0.0
      %381 = vmatpush1.msra.mxu0 0.0
      %382 = vmatprep.subr.mxu0 0.0
      %383 = vmatpush1.msra.mxu0 0.0
      %384 = vmatprep.subr.mxu0 0.0
      %385 = vmatpush1.msra.mxu0 0.0
      %386 = vmatprep.subr.mxu0 0.0
      %387 = vmatpush1.msra.mxu0 0.0
      %388 = vmatprep.subr.mxu0 0.0
      %389 = vmatpush1.msra.mxu0 0.0
      %390 = vmatprep.subr.mxu0 0.0
      %391 = vmatpush1.msra.mxu0 0.0
      %392 = vmatprep.subr.mxu0 0.0
      %393 = vmatpush1.msra.mxu0 0.0
      %394 = vmatprep.mubr.f32.mxu0 0.0
      %395 = vmatmul.mubr.f32.gmra.mrb[0].mxu0 %v202
      %v396 = vpop.f32.mrb[0].mxu0
      %v397 = vadd.f32 %v253, %v396
      %v398 = vpop.f32.mrb[0].mxu0
      %399 = vmatprep.mubr.f32.mxu0 0.0
      %400 = vmatmul.mubr.f32.gmra.mrb[0].mxu0 %v203
      %v401 = vpop.f32.mrb[0].mxu0
      %v402 = vadd.f32 %v258, %v401
      %v403 = vpop.f32.mrb[0].mxu0
      %404 = vmatprep.mubr.f32.mxu0 0.0
      %405 = vmatmul.mubr.f32.gmra.mrb[0].mxu0 %v204
      %v406 = vpop.f32.mrb[0].mxu0
      %v407 = vadd.f32 %v263, %v406
      %v408 = vpop.f32.mrb[0].mxu0
      %409 = vmatprep.mubr.f32.mxu0 0.0
      %410 = vmatmul.mubr.f32.gmra.mrb[0].mxu0 %v205
      %v411 = vpop.f32.mrb[0].mxu0
      %v412 = vadd.f32 %v268, %v411
      %v413 = vpop.f32.mrb[0].mxu0
      %414 = vmatprep.mubr.f32.mxu0 0.0
      %415 = vmatmul.mubr.f32.gmra.mrb[0].mxu0 %v206
      %v416 = vpop.f32.mrb[0].mxu0
      %v417 = vadd.f32 %v273, %v416
      %v418 = vpop.f32.mrb[0].mxu0
      %419 = vmatprep.mubr.f32.mxu0 0.0
      %420 = vmatmul.mubr.f32.gmra.mrb[0].mxu0 %v207
      %v421 = vpop.f32.mrb[0].mxu0
      %v422 = vadd.f32 %v278, %v421
      %v423 = vpop.f32.mrb[0].mxu0
      %424 = vmatprep.mubr.f32.mxu0 0.0
      %425 = vmatmul.mubr.f32.gmra.mrb[0].mxu0 %v208
      %v426 = vpop.f32.mrb[0].mxu0
      %v427 = vadd.f32 %v283, %v426
      %v428 = vpop.f32.mrb[0].mxu0
      %429 = vmatprep.mubr.f32.mxu0 0.0
      %430 = vmatmul.mubr.f32.gmra.mrb[0].mxu0 %v209
      %v431 = vpop.f32.mrb[0].mxu0
      %v432 = vadd.f32 %v288, %v431
      %v433 = vpop.f32.mrb[0].mxu0
      %434 = vmatprep.mubr.f32.mxu0 0.0
      %435 = vmatmul.mubr.f32.gmra.mrb[0].mxu0 %v210
      %v436 = vpop.f32.mrb[0].mxu0
      %v437 = vadd.f32 %v293, %v436
      %v438 = vpop.f32.mrb[0].mxu0
      %439 = vmatprep.mubr.f32.mxu0 0.0
      %440 = vmatmul.mubr.f32.gmra.mrb[0].mxu0 %v211
      %v441 = vpop.f32.mrb[0].mxu0
      %v442 = vadd.f32 %v298, %v441
      %v443 = vpop.f32.mrb[0].mxu0
      %444 = vmatprep.mubr.f32.mxu0 0.0
      %445 = vmatmul.mubr.f32.gmra.mrb[0].mxu0 %v212
      %v446 = vpop.f32.mrb[0].mxu0
      %v447 = vadd.f32 %v303, %v446
      %v448 = vpop.f32.mrb[0].mxu0
      %449 = vmatprep.mubr.f32.mxu0 0.0
      %450 = vmatmul.mubr.f32.gmra.mrb[0].mxu0 %v213
      %v451 = vpop.f32.mrb[0].mxu0
      %v452 = vadd.f32 %v308, %v451
      %v453 = vpop.f32.mrb[0].mxu0
      %454 = vmatprep.mubr.f32.mxu0 0.0
      %455 = vmatmul.mubr.f32.gmra.mrb[0].mxu0 %v214
      %v456 = vpop.f32.mrb[0].mxu0
      %v457 = vadd.f32 %v313, %v456
      %v458 = vpop.f32.mrb[0].mxu0
      %459 = vmatprep.mubr.f32.mxu0 0.0
      %460 = vmatmul.mubr.f32.gmra.mrb[0].mxu0 %v215
      %v461 = vpop.f32.mrb[0].mxu0
      %v462 = vadd.f32 %v318, %v461
      %v463 = vpop.f32.mrb[0].mxu0
      %464 = vmatprep.mubr.f32.mxu0 0.0
      %465 = vmatmul.mubr.f32.gmra.mrb[0].mxu0 %v216
      %v466 = vpop.f32.mrb[0].mxu0
      %v467 = vadd.f32 %v323, %v466
      %v468 = vpop.f32.mrb[0].mxu0
      %469 = vmatprep.mubr.f32.mxu0 0.0
      %470 = vmatmul.mubr.f32.gmra.mrb[0].mxu0 %v217
      %v471 = vpop.f32.mrb[0].mxu0
      %v472 = vadd.f32 %v328, %v471
      %v473 = vpop.f32.mrb[0].mxu0
      %474 = vdwg.mxu0
      %vm475 = vcmask 130048
      %v476 = vsel %vm475, %v397, 0.0
      %v477 = vsel %vm475, %v402, 0.0
      %v478 = vadd.f32 %v476, %v477
      %v479 = vsel %vm475, %v407, 0.0
      %v480 = vadd.f32 %v478, %v479
      %v481 = vsel %vm475, %v412, 0.0
      %v482 = vadd.f32 %v480, %v481
      %v483 = vsel %vm475, %v417, 0.0
      %v484 = vadd.f32 %v482, %v483
      %v485 = vsel %vm475, %v422, 0.0
      %v486 = vadd.f32 %v484, %v485
      %v487 = vsel %vm475, %v427, 0.0
      %v488 = vadd.f32 %v486, %v487
      %v489 = vsel %vm475, %v432, 0.0
      %v490 = vadd.f32 %v488, %v489
      %v491 = vsel %vm475, %v437, 0.0
      %v492 = vadd.f32 %v490, %v491
      %v493 = vsel %vm475, %v442, 0.0
      %v494 = vadd.f32 %v492, %v493
      %v495 = vsel %vm475, %v447, 0.0
      %v496 = vadd.f32 %v494, %v495
      %v497 = vsel %vm475, %v452, 0.0
      %v498 = vadd.f32 %v496, %v497
      %v499 = vsel %vm475, %v457, 0.0
      %v500 = vadd.f32 %v498, %v499
      %v501 = vsel %vm475, %v462, 0.0
      %v502 = vadd.f32 %v500, %v501
      %v503 = vsel %vm475, %v467, 0.0
      %v504 = vadd.f32 %v502, %v503
      %v505 = vsel %vm475, %v472, 0.0
      %v506 = vadd.f32 %v504, %v505
      %v507 = vrot.slane %v506, 4
      %v508 = vadd.f32 %v506, %v507
      %v509 = vrot.slane %v508, 2
      %v510 = vadd.f32 %v508, %v509
      %v511 = vrot.slane %v510, 1
      %v512 = vadd.f32 %v510, %v511
      %v513 = vmul.f32 %v512, 0.03125
      %v514 = vmul.f32 %v397, %v397
      %v515 = vmul.f32 %v402, %v402
      %v516 = vmul.f32 %v407, %v407
      %v517 = vmul.f32 %v412, %v412
      %v518 = vmul.f32 %v417, %v417
      %v519 = vmul.f32 %v422, %v422
      %v520 = vmul.f32 %v427, %v427
      %v521 = vmul.f32 %v432, %v432
      %v522 = vmul.f32 %v437, %v437
      %v523 = vmul.f32 %v442, %v442
      %v524 = vmul.f32 %v447, %v447
      %v525 = vmul.f32 %v452, %v452
      %v526 = vmul.f32 %v457, %v457
      %v527 = vmul.f32 %v462, %v462
      %v528 = vmul.f32 %v467, %v467
      %v529 = vmul.f32 %v472, %v472
      %v530 = vsel %vm475, %v514, 0.0
      %v531 = vsel %vm475, %v515, 0.0
      %v532 = vadd.f32 %v530, %v531
      %v533 = vsel %vm475, %v516, 0.0
      %v534 = vadd.f32 %v532, %v533
      %v535 = vsel %vm475, %v517, 0.0
      %v536 = vadd.f32 %v534, %v535
      %v537 = vsel %vm475, %v518, 0.0
      %v538 = vadd.f32 %v536, %v537
      %v539 = vsel %vm475, %v519, 0.0
      %v540 = vadd.f32 %v538, %v539
      %v541 = vsel %vm475, %v520, 0.0
      %v542 = vadd.f32 %v540, %v541
      %v543 = vsel %vm475, %v521, 0.0
      %v544 = vadd.f32 %v542, %v543
      %v545 = vsel %vm475, %v522, 0.0
      %v546 = vadd.f32 %v544, %v545
      %v547 = vsel %vm475, %v523, 0.0
      %v548 = vadd.f32 %v546, %v547
      %v549 = vsel %vm475, %v524, 0.0
      %v550 = vadd.f32 %v548, %v549
      %v551 = vsel %vm475, %v525, 0.0
      %v552 = vadd.f32 %v550, %v551
      %v553 = vsel %vm475, %v526, 0.0
      %v554 = vadd.f32 %v552, %v553
      %v555 = vsel %vm475, %v527, 0.0
      %v556 = vadd.f32 %v554, %v555
      %v557 = vsel %vm475, %v528, 0.0
      %v558 = vadd.f32 %v556, %v557
      %v559 = vsel %vm475, %v529, 0.0
      %v560 = vadd.f32 %v558, %v559
      %v561 = vrot.slane %v560, 4
      %v562 = vadd.f32 %v560, %v561
      %v563 = vrot.slane %v562, 2
      %v564 = vadd.f32 %v562, %v563
      %v565 = vrot.slane %v564, 1
      %v566 = vadd.f32 %v564, %v565
      %v567 = vmul.f32 %v566, 0.03125
      %v568 = vmul.f32 %v513, %v513
      %v569 = vsub.f32 %v567, %v568
      %v570 = vadd.f32 %v569, 1e-05
      %v571 = vrsqrt.pop %v570
      %v572 = vsub.f32 %v397, %v513
      %v573 = vsub.f32 %v402, %v513
      %v574 = vsub.f32 %v407, %v513
      %v575 = vsub.f32 %v412, %v513
      %v576 = vsub.f32 %v417, %v513
      %v577 = vsub.f32 %v422, %v513
      %v578 = vsub.f32 %v427, %v513
      %v579 = vsub.f32 %v432, %v513
      %v580 = vsub.f32 %v437, %v513
      %v581 = vsub.f32 %v442, %v513
      %v582 = vsub.f32 %v447, %v513
      %v583 = vsub.f32 %v452, %v513
      %v584 = vsub.f32 %v457, %v513
      %v585 = vsub.f32 %v462, %v513
      %v586 = vsub.f32 %v467, %v513
      %v587 = vsub.f32 %v472, %v513
      %v588 = vmul.f32 %v572, %v571
      %v589 = vmul.f32 %v573, %v571
      %v590 = vmul.f32 %v574, %v571
      %v591 = vmul.f32 %v575, %v571
      %v592 = vmul.f32 %v576, %v571
      %v593 = vmul.f32 %v577, %v571
      %v594 = vmul.f32 %v578, %v571
      %v595 = vmul.f32 %v579, %v571
      %v596 = vmul.f32 %v580, %v571
      %v597 = vmul.f32 %v581, %v571
      %v598 = vmul.f32 %v582, %v571
      %v599 = vmul.f32 %v583, %v571
      %v600 = vmul.f32 %v584, %v571
      %v601 = vmul.f32 %v585, %v571
      %v602 = vmul.f32 %v586, %v571
      %v603 = vmul.f32 %v587, %v571
      %604 = vset.pattern.permute.xlu0 1
      %605 = vperm.xlu0 %604, %v234
      %v606 = vpop.permute.xlu0 %605
      %608 = vset.pattern.permute.xlu0 1
      %609 = vperm.xlu0 %608, %v235
      %v610 = vpop.permute.xlu0 %609
      %612 = vset.pattern.permute.xlu0 1
      %613 = vperm.xlu0 %612, %v236
      %v614 = vpop.permute.xlu0 %613
      %616 = vset.pattern.permute.xlu0 1
      %617 = vperm.xlu0 %616, %v237
      %v618 = vpop.permute.xlu0 %617
      %620 = vset.pattern.permute.xlu0 1
      %621 = vperm.xlu0 %620, %v238
      %v622 = vpop.permute.xlu0 %621
      %624 = vset.pattern.permute.xlu0 1
      %625 = vperm.xlu0 %624, %v239
      %v626 = vpop.permute.xlu0 %625
      %628 = vset.pattern.permute.xlu0 1
      %629 = vperm.xlu0 %628, %v240
      %v630 = vpop.permute.xlu0 %629
      %632 = vset.pattern.permute.xlu0 1
      %633 = vperm.xlu0 %632, %v241
      %v634 = vpop.permute.xlu0 %633
      %636 = vset.pattern.permute.xlu0 1
      %637 = vperm.xlu0 %636, %v242
      %v638 = vpop.permute.xlu0 %637
      %640 = vset.pattern.permute.xlu0 1
      %641 = vperm.xlu0 %640, %v243
      %v642 = vpop.permute.xlu0 %641
      %644 = vset.pattern.permute.xlu0 1
      %645 = vperm.xlu0 %644, %v244
      %v646 = vpop.permute.xlu0 %645
      %648 = vset.pattern.permute.xlu0 1
      %649 = vperm.xlu0 %648, %v245
      %v650 = vpop.permute.xlu0 %649
      %652 = vset.pattern.permute.xlu0 1
      %653 = vperm.xlu0 %652, %v246
      %v654 = vpop.permute.xlu0 %653
      %656 = vset.pattern.permute.xlu0 1
      %657 = vperm.xlu0 %656, %v247
      %v658 = vpop.permute.xlu0 %657
      %660 = vset.pattern.permute.xlu0 1
      %661 = vperm.xlu0 %660, %v248
      %v662 = vpop.permute.xlu0 %661
      %664 = vset.pattern.permute.xlu0 1
      %665 = vperm.xlu0 %664, %v249
      %v666 = vpop.permute.xlu0 %665
      %v668 = vmul.f32 %v588, %v606
      %v669 = vmul.f32 %v589, %v610
      %v670 = vmul.f32 %v590, %v614
      %v671 = vmul.f32 %v591, %v618
      %v672 = vmul.f32 %v592, %v622
      %v673 = vmul.f32 %v593, %v626
      %v674 = vmul.f32 %v594, %v630
      %v675 = vmul.f32 %v595, %v634
      %v676 = vmul.f32 %v596, %v638
      %v677 = vmul.f32 %v597, %v642
      %v678 = vmul.f32 %v598, %v646
      %v679 = vmul.f32 %v599, %v650
      %v680 = vmul.f32 %v600, %v654
      %v681 = vmul.f32 %v601, %v658
      %v682 = vmul.f32 %v602, %v662
      %v683 = vmul.f32 %v603, %v666
      %684 = vset.pattern.permute.xlu0 2
      %685 = vperm.xlu0 %684, %v234
      %v686 = vpop.permute.xlu0 %685
      %688 = vset.pattern.permute.xlu0 2
      %689 = vperm.xlu0 %688, %v235
      %v690 = vpop.permute.xlu0 %689
      %692 = vset.pattern.permute.xlu0 2
      %693 = vperm.xlu0 %692, %v236
      %v694 = vpop.permute.xlu0 %693
      %696 = vset.pattern.permute.xlu0 2
      %697 = vperm.xlu0 %696, %v237
      %v698 = vpop.permute.xlu0 %697
      %700 = vset.pattern.permute.xlu0 2
      %701 = vperm.xlu0 %700, %v238
      %v702 = vpop.permute.xlu0 %701
      %704 = vset.pattern.permute.xlu0 2
      %705 = vperm.xlu0 %704, %v239
      %v706 = vpop.permute.xlu0 %705
      %708 = vset.pattern.permute.xlu0 2
      %709 = vperm.xlu0 %708, %v240
      %v710 = vpop.permute.xlu0 %709
      %712 = vset.pattern.permute.xlu0 2
      %713 = vperm.xlu0 %712, %v241
      %v714 = vpop.permute.xlu0 %713
      %716 = vset.pattern.permute.xlu0 2
      %717 = vperm.xlu0 %716, %v242
      %v718 = vpop.permute.xlu0 %717
      %720 = vset.pattern.permute.xlu0 2
      %721 = vperm.xlu0 %720, %v243
      %v722 = vpop.permute.xlu0 %721
      %724 = vset.pattern.permute.xlu0 2
      %725 = vperm.xlu0 %724, %v244
      %v726 = vpop.permute.xlu0 %725
      %728 = vset.pattern.permute.xlu0 2
      %729 = vperm.xlu0 %728, %v245
      %v730 = vpop.permute.xlu0 %729
      %732 = vset.pattern.permute.xlu0 2
      %733 = vperm.xlu0 %732, %v246
      %v734 = vpop.permute.xlu0 %733
      %736 = vset.pattern.permute.xlu0 2
      %737 = vperm.xlu0 %736, %v247
      %v738 = vpop.permute.xlu0 %737
      %740 = vset.pattern.permute.xlu0 2
      %741 = vperm.xlu0 %740, %v248
      %v742 = vpop.permute.xlu0 %741
      %744 = vset.pattern.permute.xlu0 2
      %745 = vperm.xlu0 %744, %v249
      %v746 = vpop.permute.xlu0 %745
      %v748 = vadd.f32 %v668, %v686
      %v749 = vadd.f32 %v669, %v690
      %v750 = vadd.f32 %v670, %v694
      %v751 = vadd.f32 %v671, %v698
      %v752 = vadd.f32 %v672, %v702
      %v753 = vadd.f32 %v673, %v706
      %v754 = vadd.f32 %v674, %v710
      %v755 = vadd.f32 %v675, %v714
      %v756 = vadd.f32 %v676, %v718
      %v757 = vadd.f32 %v677, %v722
      %v758 = vadd.f32 %v678, %v726
      %v759 = vadd.f32 %v679, %v730
      %v760 = vadd.f32 %v680, %v734
      %v761 = vadd.f32 %v681, %v738
      %v762 = vadd.f32 %v682, %v742
      %v763 = vadd.f32 %v683, %v746
      %764 = vst.msk [vmem:[%s201] sm:$0xff] %vm475, %v748
      %765 = vst.msk [vmem:[%s201 + $0x8] sm:$0xff] %vm475, %v749
      %766 = vst.msk [vmem:[%s201 + $0x10] sm:$0xff] %vm475, %v750
      %767 = vst.msk [vmem:[%s201 + $0x18] sm:$0xff] %vm475, %v751
      %768 = vst.msk [vmem:[%s201 + $0x20] sm:$0xff] %vm475, %v752
      %769 = vst.msk [vmem:[%s201 + $0x28] sm:$0xff] %vm475, %v753
      %770 = vst.msk [vmem:[%s201 + $0x30] sm:$0xff] %vm475, %v754
      %771 = vst.msk [vmem:[%s201 + $0x38] sm:$0xff] %vm475, %v755
      %772 = vst.msk [vmem:[%s201 + $0x40] sm:$0xff] %vm475, %v756
      %773 = vst.msk [vmem:[%s201 + $0x48] sm:$0xff] %vm475, %v757
      %774 = vst.msk [vmem:[%s201 + $0x50] sm:$0xff] %vm475, %v758
      %775 = vst.msk [vmem:[%s201 + $0x58] sm:$0xff] %vm475, %v759
      %776 = vst.msk [vmem:[%s201 + $0x60] sm:$0xff] %vm475, %v760
      %777 = vst.msk [vmem:[%s201 + $0x68] sm:$0xff] %vm475, %v761
      %778 = vst.msk [vmem:[%s201 + $0x70] sm:$0xff] %vm475, %v762
      %779 = vst.msk [vmem:[%s201 + $0x78] sm:$0xff] %vm475, %v763
      %p780 = scmp.lt.s32.totalorder %s18, 1
      %s781 = scalar_select %p780, %s18, 1
      %p782 = scmp.lt.s32.totalorder %s19, 0
      %s783 = scalar_select %p782, %s19, 0
      %s784 = smul.addr %s781, 16
      %s785 = sadd.s32 %s783, %s784
      %s786 = smul.addr %s785, 8
      %s787 = scalar_lea.vmem %s3, %s786
      // Predicated region
      $region33: #{tpu_custom_call.1} parent=31 // pred_check
        %p788 = pneg %p116
      $region34: #{tpu_custom_call.1} parent=31 // pred_check_branch
        %790 = sbr.rel (%p788) target = $region36
      $region35: #{tpu_custom_call.1} parent=31 // pred_region
        _
      $region36: #{tpu_custom_call.1} parent=31 // pred_fallthru
        _
    $region32: #{tpu_custom_call.1} parent=5 // pred_fallthru
      _
    %p791 = scmp.le.s32.totalorder 2, %s9
    // Predicated region
    $region37: #{tpu_custom_call.1} parent=5 // pred_check
      %p792 = pneg %p791
    $region38: #{tpu_custom_call.1} parent=5 // pred_check_branch
      %794 = sbr.rel (%p792) target = $region40
    $region39: #{tpu_custom_call.1} parent=5 // pred_region
      %s795 = ssub.s32 %s9, 2
      // Predicated region
      $region41: #{tpu_custom_call.1} parent=39 // pred_check
        %p796 = pneg %p122
      $region42: #{tpu_custom_call.1} parent=39 // pred_check_branch
        %798 = sbr.rel (%p796) target = $region44
      $region43: #{tpu_custom_call.1} parent=39 // pred_region
        %p799 = scmp.lt.s32.totalorder %s20, 1
        %s800 = scalar_select %p799, %s20, 1
        %p801 = scmp.lt.s32.totalorder %s21, 0
        %s802 = scalar_select %p801, %s21, 0
        %s803 = smul.addr %s800, 16
        %s804 = sadd.s32 %s802, %s803
        %s805 = smul.addr %s804, 8
        %s806 = scalar_lea.vmem %s3, %s805
      $region44: #{tpu_custom_call.1} parent=39 // pred_fallthru
        _
    $region40: #{tpu_custom_call.1} parent=5 // pred_fallthru
      _
  $region6: #{tpu_custom_call.1} parent=0 // loop_footer
    %s13 = sadd.s32 1, %s9
  $region7: #{tpu_custom_call.1} parent=0 // loop_footer_branch
    %8 = sbr.rel target = $region3
  $region8: #{tpu_custom_call.1} parent=0 // loop_exit
    _

</llo_original>
